<compile_context>
chip_gen: v7x
topology: tpu7x:2x2x1
jax: 0.10.0
libtpu: 0.0.40
codegen_flags: <defaults>
</compile_context>

<pallas_src>
import jax
import jax.numpy as jnp
from jax.experimental import pallas as pl
from jax.experimental.pallas import tpu as pltpu

F_DIM = 32       # f_dim of the decoder
EPS = 1e-5


def _occnet_kernel(smp_ref, w1_ref, wr1_ref, wr2_ref, col_ref, bout_ref, out_ref):
    """One (batch b, point-tile n) grid step. Activations are (F, TILE_N)."""
    x = smp_ref[...]                                   # (3, T)
    col = col_ref[...]                                 # (F, 3): [b1_eff | br1_eff | wout_eff]

    # fc1 (+ folded resnet.bn1): (F,3) @ (3,T) -> (F,T)
    h = jnp.dot(w1_ref[...], x, preferred_element_type=jnp.float32) + col[:, 0:1]
    init = h                                           # residual is taken after bn1

    # resnet.fc1 (+ folded resnet.bn2)
    h = jnp.maximum(h, 0.0)
    h = jnp.dot(wr1_ref[...], h, preferred_element_type=jnp.float32) + col[:, 1:2]

    # resnet.fc2 (bias folded into the final scalar) + residual
    h = jnp.maximum(h, 0.0)
    h = init + jnp.dot(wr2_ref[...], h, preferred_element_type=jnp.float32)

    # final CBN + fc2, folded into a per-batch weighted sum over the 32 channels.
    # VPU multiply + XLU sublane reduce instead of a (1,32)@(32,T) MXU matmul.
    out_ref[...] = (jnp.sum(col[:, 2:3] * h, axis=0, keepdims=True)
                    + bout_ref[...])                   # (1, T) lane-dense store


def _pick_tile(n, batch):
    """Largest lane-dense tile dividing N, capped at 1024 (vreg-pressure cap:
    h + init at T=1024 already fill the 64-vreg file).  For B == 1, keep at
    least 2 N-tiles so both v7x TensorCores get work."""
    candidates = [t for t in (1024, 512, 256, 128) if n % t == 0]
    if not candidates:
        # TODO(synk): ragged N (padding the trailing tile) is not supported.
        raise ValueError(f"N={n} must be a multiple of 128")
    tile = candidates[0]
    if batch == 1:
        for t in candidates:
            if n // t >= 2:
                tile = t
                break
    return tile


def occnet_decoder(embedding, samples, p):
    """Eval-mode forward of OccNetDecoder.
    embedding: (B, F) shape code; samples: (B, N, 3) query points.
    Returns (B, N, 1) occupancy logits (PyTorch output convention)."""
    B, N, _ = samples.shape
    f = F_DIM
    tile_n = _pick_tile(N, B)
    grid = (B, N // tile_n)

    # ---- fold every CBN into the adjacent linear layer (wrapper-side) -------
    # CBN(h) = gamma*(h-rm)/sqrt(rv+eps) + beta = s*h + t  (per-batch s, t)
    # CBN(W@x + b) = (s*W)@x + (s*b + t);  fc2(CBN(h)) = (wout*s)@h + wout@t + b2
    def cbn_scale_shift(prefix):
        rm = p.get(prefix + '_running_mean', 0.0)      # buffer init: zeros(1)
        rv = p.get(prefix + '_running_var', 1.0)       # buffer init: ones(1)
        inv_std = 1.0 / jnp.sqrt(rv + EPS)
        beta = embedding @ p[prefix + '_beta_w'].T + p[prefix + '_beta_b']
        gamma = embedding @ p[prefix + '_gamma_w'].T + p[prefix + '_gamma_b']
        scale = gamma * inv_std
        shift = beta - scale * rm
        return scale, shift                            # each (B, F)

    s1, t1 = cbn_scale_shift('bn1')                    # resnet.bn1
    s2, t2 = cbn_scale_shift('bn2')                    # resnet.bn2
    s3, t3 = cbn_scale_shift('bn')                     # final bn

    w1_eff = s1[:, :, None] * p['fc1_w'][None]         # (B, F, 3)
    b1_eff = s1 * p['fc1_b'][None, :] + t1             # (B, F)
    wr1_eff = s2[:, :, None] * p['res_fc1_w'][None]    # (B, F, F)
    br1_eff = s2 * p['res_fc1_b'][None, :] + t2        # (B, F)

    wout_row = p['fc2_w'][0]                           # (F,)
    wout_eff = wout_row[None, :] * s3                  # (B, F)
    # resnet.fc2 bias and the final CBN shift collapse into one per-batch scalar
    bout_eff = (wout_eff @ p['res_fc2_b'] + t3 @ wout_row + p['fc2_b'][0])  # (B,)

    colpack = jnp.stack([b1_eff, br1_eff, wout_eff], axis=-1)   # (B, F, 3)
    bout_eff = bout_eff.reshape(B, 1, 1).astype(jnp.float32)

    # TODO(synk): for very large point clouds, supply samples pre-transposed
    # (B, 3, N) upstream to avoid this extra HBM read+write of the samples.
    samples_t = jnp.transpose(samples, (0, 2, 1))      # (B, 3, N)

    out = pl.pallas_call(
        _occnet_kernel,
        out_shape=jax.ShapeDtypeStruct((B, 1, N), jnp.float32),
        grid_spec=pltpu.PrefetchScalarGridSpec(
            num_scalar_prefetch=0,
            grid=grid,
            in_specs=[
                pl.BlockSpec((None, 3, tile_n), lambda b, n: (b, 0, n)),  # samples tile
                pl.BlockSpec((None, f, 3), lambda b, n: (b, 0, 0)),       # fc1 W (bn1 folded)
                pl.BlockSpec((None, f, f), lambda b, n: (b, 0, 0)),       # resnet.fc1 W (bn2 folded)
                pl.BlockSpec((f, f), lambda b, n: (0, 0)),                # resnet.fc2 W (shared)
                pl.BlockSpec((None, f, 3), lambda b, n: (b, 0, 0)),       # [b1|br1|wout] columns
                pl.BlockSpec((None, 1, 1), lambda b, n: (b, 0, 0)),       # folded output bias
            ],
            out_specs=pl.BlockSpec((None, 1, tile_n), lambda b, n: (b, 0, n)),
        ),
        compiler_params=pltpu.CompilerParams(
            dimension_semantics=("parallel", "parallel")),
    )(samples_t, w1_eff, wr1_eff, p['res_fc2_w'], colpack, bout_eff)

    # (B,1,N) and (B,N,1) share the same memory order -> free reshape.
    return out.reshape(B, N, 1)


def init_params(key, f=F_DIM):
    """Deterministic synthetic parameters (torch.nn.Linear-style uniform init),
    stored in PyTorch (out_features, in_features) layout."""
    layers = [
        ('fc1', 3, f),
        ('bn1_beta', f, f), ('bn1_gamma', f, f),
        ('res_fc1', f, f),
        ('bn2_beta', f, f), ('bn2_gamma', f, f),
        ('res_fc2', f, f),
        ('bn_beta', f, f), ('bn_gamma', f, f),
        ('fc2', f, 1),
    ]
    ks = jax.random.split(key, len(layers))
    p = {}
    for k, (name, fin, fout) in zip(ks, layers):
        bound = 1.0 / (fin ** 0.5)
        kw, kb = jax.random.split(k)
        p[name + '_w'] = jax.random.uniform(kw, (fout, fin), jnp.float32, -bound, bound)
        p[name + '_b'] = jax.random.uniform(kb, (fout,), jnp.float32, -bound, bound)
    return p


def reference(embedding, samples, p):
    """Pure-JAX, un-fused reference of the PyTorch forward (eval mode)."""
    def lin(x, w, b):
        return x @ w.T + b

    def cbn(h, pre):
        rm = p.get(pre + '_running_mean', 0.0)
        rv = p.get(pre + '_running_var', 1.0)
        beta = lin(embedding, p[pre + '_beta_w'], p[pre + '_beta_b'])
        gamma = lin(embedding, p[pre + '_gamma_w'], p[pre + '_gamma_b'])
        hn = (h - rm) / jnp.sqrt(rv + EPS)
        return gamma[:, None, :] * hn + beta[:, None, :]

    h = lin(samples, p['fc1_w'], p['fc1_b'])
    h = cbn(h, 'bn1')
    init = h
    h = jax.nn.relu(h)
    h = lin(h, p['res_fc1_w'], p['res_fc1_b'])
    h = cbn(h, 'bn2')
    h = jax.nn.relu(h)
    h = lin(h, p['res_fc2_w'], p['res_fc2_b'])
    h = init + h
    h = cbn(h, 'bn')
    return lin(h, p['fc2_w'], p['fc2_b'])


if __name__ == "__main__":
    key = jax.random.PRNGKey(0)
    kp, ke, ks = jax.random.split(key, 3)

    B, N = 2, 2048
    params = init_params(kp)
    embedding = jax.random.normal(ke, (B, F_DIM), jnp.float32)
    samples = jax.random.uniform(ks, (B, N, 3), jnp.float32, -0.5, 0.5)

    out = occnet_decoder(embedding, samples, params)
    out = jax.block_until_ready(out)

    ref = reference(embedding, samples, params)
    assert out.shape == (B, N, 1)
    assert jnp.allclose(out, ref, rtol=1e-4, atol=1e-4), \
        f"max abs err {jnp.max(jnp.abs(out - ref))}"
    print("KERNEL_OK")
</pallas_src>

<mosaic_0001>
module attributes {stable_mosaic.version = 11 : i64} {
  func.func @_occnet_kernel(%arg0: i32, %arg1: i32, %arg2: memref<1x3x1024xf32, #tpu.memory_space<vmem>>, %arg3: memref<1x32x3xf32, #tpu.memory_space<vmem>>, %arg4: memref<1x32x32xf32, #tpu.memory_space<vmem>>, %arg5: memref<32x32xf32, #tpu.memory_space<vmem>>, %arg6: memref<1x32x3xf32, #tpu.memory_space<vmem>>, %arg7: memref<1x1x1xf32, #tpu.memory_space<vmem>>, %arg8: memref<1x1x1024xf32, #tpu.memory_space<vmem>>) attributes {dimension_semantics = [#tpu.dimension_semantics<parallel>, #tpu.dimension_semantics<parallel>], iteration_bounds = array<i64: 2, 2>, scalar_prefetch = 0 : i64, scratch_operands = 0 : i64, tpu.core_type = #tpu.core_type<tc>, window_params = [{transform_indices = @transform_0, window_bounds = array<i64: 1, 3, 1024>}, {transform_indices = @transform_1, window_bounds = array<i64: 1, 32, 3>}, {transform_indices = @transform_2, window_bounds = array<i64: 1, 32, 32>}, {pipeline_mode = #tpu.pipeline_mode<synchronous>, transform_indices = @transform_3, window_bounds = array<i64: 32, 32>}, {transform_indices = @transform_4, window_bounds = array<i64: 1, 32, 3>}, {transform_indices = @transform_5, window_bounds = array<i64: 1, 1, 1>}, {transform_indices = @transform_6, window_bounds = array<i64: 1, 1, 1024>}]} {
    %c0 = arith.constant 0 : index
    %c0_0 = arith.constant 0 : index
    %c0_1 = arith.constant 0 : index
    %0 = vector.load %arg2[%c0, %c0_0, %c0_1] : memref<1x3x1024xf32, #tpu.memory_space<vmem>>, vector<1x3x1024xf32>
    %1 = vector.shape_cast %0 : vector<1x3x1024xf32> to vector<3x1024xf32>
    %c0_2 = arith.constant 0 : index
    %c0_3 = arith.constant 0 : index
    %c0_4 = arith.constant 0 : index
    %2 = vector.load %arg6[%c0_2, %c0_3, %c0_4] : memref<1x32x3xf32, #tpu.memory_space<vmem>>, vector<1x32x3xf32>
    %3 = vector.shape_cast %2 : vector<1x32x3xf32> to vector<32x3xf32>
    %c0_5 = arith.constant 0 : index
    %c0_6 = arith.constant 0 : index
    %c0_7 = arith.constant 0 : index
    %4 = vector.load %arg3[%c0_5, %c0_6, %c0_7] : memref<1x32x3xf32, #tpu.memory_space<vmem>>, vector<1x32x3xf32>
    %5 = vector.shape_cast %4 : vector<1x32x3xf32> to vector<32x3xf32>
    %cst = arith.constant dense<0.000000e+00> : vector<32x1024xf32>
    %6 = tpu.matmul %5, %1, %cst {dimension_numbers = #tpu.dot_dimension_numbers<[1], [0], [0], [1], [0, 0, 1, 1], [], []>} : vector<32x3xf32>, vector<3x1024xf32>, vector<32x1024xf32> -> vector<32x1024xf32>
    %7 = vector.extract_strided_slice %3 {offsets = [0, 0], sizes = [32, 1], strides = [1, 1]} : vector<32x3xf32> to vector<32x1xf32>
    %8 = vector.broadcast %7 : vector<32x1xf32> to vector<32x1024xf32>
    %9 = arith.addf %6, %8 : vector<32x1024xf32>
    %cst_8 = arith.constant 0.000000e+00 : f32
    %10 = vector.broadcast %cst_8 : f32 to vector<32x1024xf32>
    %11 = arith.maximumf %9, %10 : vector<32x1024xf32>
    %c0_9 = arith.constant 0 : index
    %c0_10 = arith.constant 0 : index
    %c0_11 = arith.constant 0 : index
    %12 = vector.load %arg4[%c0_9, %c0_10, %c0_11] : memref<1x32x32xf32, #tpu.memory_space<vmem>>, vector<1x32x32xf32>
    %13 = vector.shape_cast %12 : vector<1x32x32xf32> to vector<32x32xf32>
    %cst_12 = arith.constant dense<0.000000e+00> : vector<32x1024xf32>
    %14 = tpu.matmul %13, %11, %cst_12 {dimension_numbers = #tpu.dot_dimension_numbers<[1], [0], [0], [1], [0, 0, 1, 1], [], []>} : vector<32x32xf32>, vector<32x1024xf32>, vector<32x1024xf32> -> vector<32x1024xf32>
    %15 = vector.extract_strided_slice %3 {offsets = [0, 1], sizes = [32, 1], strides = [1, 1]} : vector<32x3xf32> to vector<32x1xf32>
    %16 = vector.broadcast %15 : vector<32x1xf32> to vector<32x1024xf32>
    %17 = arith.addf %14, %16 : vector<32x1024xf32>
    %cst_13 = arith.constant 0.000000e+00 : f32
    %18 = vector.broadcast %cst_13 : f32 to vector<32x1024xf32>
    %19 = arith.maximumf %17, %18 : vector<32x1024xf32>
    %c0_14 = arith.constant 0 : index
    %c0_15 = arith.constant 0 : index
    %20 = vector.load %arg5[%c0_14, %c0_15] : memref<32x32xf32, #tpu.memory_space<vmem>>, vector<32x32xf32>
    %cst_16 = arith.constant dense<0.000000e+00> : vector<32x1024xf32>
    %21 = tpu.matmul %20, %19, %cst_16 {dimension_numbers = #tpu.dot_dimension_numbers<[1], [0], [0], [1], [0, 0, 1, 1], [], []>} : vector<32x32xf32>, vector<32x1024xf32>, vector<32x1024xf32> -> vector<32x1024xf32>
    %22 = arith.addf %9, %21 : vector<32x1024xf32>
    %23 = vector.extract_strided_slice %3 {offsets = [0, 2], sizes = [32, 1], strides = [1, 1]} : vector<32x3xf32> to vector<32x1xf32>
    %24 = vector.broadcast %23 : vector<32x1xf32> to vector<32x1024xf32>
    %25 = arith.mulf %24, %22 : vector<32x1024xf32>
    %cst_17 = arith.constant dense<0.000000e+00> : vector<1024xf32>
    %26 = vector.multi_reduction <add>, %25, %cst_17 [0] : vector<32x1024xf32> to vector<1024xf32>
    %27 = vector.shape_cast %26 : vector<1024xf32> to vector<1x1024xf32>
    %c0_18 = arith.constant 0 : index
    %c0_19 = arith.constant 0 : index
    %c0_20 = arith.constant 0 : index
    %28 = vector.load %arg7[%c0_18, %c0_19, %c0_20] : memref<1x1x1xf32, #tpu.memory_space<vmem>>, vector<1x1x1xf32>
    %29 = vector.shape_cast %28 : vector<1x1x1xf32> to vector<1x1xf32>
    %30 = vector.broadcast %29 : vector<1x1xf32> to vector<1x1024xf32>
    %31 = arith.addf %27, %30 : vector<1x1024xf32>
    %c0_21 = arith.constant 0 : index
    %c0_22 = arith.constant 0 : index
    %c0_23 = arith.constant 0 : index
    %32 = vector.load %arg8[%c0_21, %c0_22, %c0_23] : memref<1x1x1024xf32, #tpu.memory_space<vmem>>, vector<1x1x1024xf32>
    %33 = vector.shape_cast %32 : vector<1x1x1024xf32> to vector<1x1024xf32>
    %34 = vector.shape_cast %31 : vector<1x1024xf32> to vector<1x1x1024xf32>
    tpu.vector_store %arg8[%c0_21, %c0_22, %c0_23], %34 {strides = array<i32>} : memref<1x1x1024xf32, #tpu.memory_space<vmem>>, vector<1x1x1024xf32>,
    return
  }
  func.func @transform_0(%arg0: i32, %arg1: i32) -> (i32, i32, i32) {
    %c0_i32 = arith.constant 0 : i32
    %c0_i32_0 = arith.constant 0 : i32
    return %arg0, %c0_i32, %arg1 : i32, i32, i32
  }
  func.func @transform_1(%arg0: i32, %arg1: i32) -> (i32, i32, i32) {
    %c0_i32 = arith.constant 0 : i32
    %c0_i32_0 = arith.constant 0 : i32
    %c0_i32_1 = arith.constant 0 : i32
    return %arg0, %c0_i32, %c0_i32_0 : i32, i32, i32
  }
  func.func @transform_2(%arg0: i32, %arg1: i32) -> (i32, i32, i32) {
    %c0_i32 = arith.constant 0 : i32
    %c0_i32_0 = arith.constant 0 : i32
    %c0_i32_1 = arith.constant 0 : i32
    return %arg0, %c0_i32, %c0_i32_0 : i32, i32, i32
  }
  func.func @transform_3(%arg0: i32, %arg1: i32) -> (i32, i32) {
    %c0_i32 = arith.constant 0 : i32
    %c0_i32_0 = arith.constant 0 : i32
    %c0_i32_1 = arith.constant 0 : i32
    return %c0_i32, %c0_i32_0 : i32, i32
  }
  func.func @transform_4(%arg0: i32, %arg1: i32) -> (i32, i32, i32) {
    %c0_i32 = arith.constant 0 : i32
    %c0_i32_0 = arith.constant 0 : i32
    %c0_i32_1 = arith.constant 0 : i32
    return %arg0, %c0_i32, %c0_i32_0 : i32, i32, i32
  }
  func.func @transform_5(%arg0: i32, %arg1: i32) -> (i32, i32, i32) {
    %c0_i32 = arith.constant 0 : i32
    %c0_i32_0 = arith.constant 0 : i32
    %c0_i32_1 = arith.constant 0 : i32
    return %arg0, %c0_i32, %c0_i32_0 : i32, i32, i32
  }
  func.func @transform_6(%arg0: i32, %arg1: i32) -> (i32, i32, i32) {
    %c0_i32 = arith.constant 0 : i32
    %c0_i32_0 = arith.constant 0 : i32
    return %arg0, %c0_i32, %arg1 : i32, i32, i32
  }
}

</mosaic_0001>

<llo_original>
// kernel: tpu_custom_call.1
$region0: #{tpu_custom_call.1}
  #allocation0 [shape = 'u32[]', space=smem, size = 0x4, offset = 0x4, fixed_abs, tag = 'smem constant byte address 0x4 - core index']
  #allocation1 [shape = 'u32[144,128]{1,0:T(1,128)}', space=vmem, size = 0x12000, scoped, tag = 'internal scratch']
  %s0 = inlined_call_operand.vmem [shape: f32[2,3,2048], index: 0, kind: input, shape index: {}]
  %s1 = inlined_call_operand.vmem [shape: f32[2,32,3], index: 1, kind: input, shape index: {}]
  %s2 = inlined_call_operand.vmem [shape: f32[2,32,32], index: 2, kind: input, shape index: {}]
  %s3 = inlined_call_operand.vmem [shape: f32[32,32], index: 3, kind: input, shape index: {}]
  %s4 = inlined_call_operand.vmem [shape: f32[2,32,3], index: 4, kind: input, shape index: {}]
  %s5 = inlined_call_operand.vmem [shape: f32[2,1,1], index: 5, kind: input, shape index: {}]
  %s6 = inlined_call_operand.hbm [shape: f32[2,1,2048], index: 6, kind: output, shape index: {}]
  %s7 = sld [smem:[#allocation0]]
  $region57: #{tpu_custom_call.1} parent=0
    _
  %s9 = ssub.s32 1, %s7
  %s10 = scalar_select 0, %s9, %s7
  $region1: #{tpu_custom_call.1} parent=0
    #allocation2 [shape = 'u8[8192]{0}', space=vmem, size = 0x2000, scoped, tag = 'output window, operand 0']
    #allocation3 [shape = 's32[2]{0}', space=sflag, size = 0x8, scoped, tag = 'scoped memory for tpu_custom_call.1']
    %11 = vsyncpa [#allocation3], 0
    %s12 = scalar_lea.sflag [#allocation3], 1
    %13 = vsyncpa %s12, 0
    loop: start=0, step=1, limit=6
    $region2: #{tpu_custom_call.1} parent=1 // loop_pre_header
      _
    $region3: #{tpu_custom_call.1} parent=1 // loop_header
      %s15 = sphi 0, %s19
      %p16 = scmp.ge.s32.totalorder %s15, 6
      %s22 = sphi 0, %s34
      %s23 = sphi 0, %s30
      %s24 = sphi 0, %s22
      %s25 = sphi 0, %s23
      %s26 = sphi 0, %s24
      %s27 = sphi 0, %s25
      %s39 = sphi 0, %s41
      %s42 = sphi 0, %s39
      %s43 = sphi 0, %s42
      %s59 = sphi 0, %s43
      %s65 = sphi 0, %s67
      %s68 = sphi 0, %s65
      %s69 = sphi 0, %s68
      %s85 = sphi 0, %s69
      %s91 = sphi 0, %s93
      %s94 = sphi 0, %s91
      %s95 = sphi 0, %s94
      %s111 = sphi 0, %s95
      %s115 = sphi 0, %s115
      %s117 = sphi 0, %s115
      %s118 = sphi 0, %s117
      %s132 = sphi 0, %s118
      %s138 = sphi 0, %s140
      %s141 = sphi 0, %s138
      %s142 = sphi 0, %s141
      %s158 = sphi 0, %s142
      %s164 = sphi 0, %s166
      %s167 = sphi 0, %s164
      %s168 = sphi 0, %s167
      %s184 = sphi 0, %s168
      %s192 = sphi 0, %s194
      %s195 = sphi 0, %s192
      %s196 = sphi 0, %s195
      %s212 = sphi 0, %s196
    $region4: #{tpu_custom_call.1} parent=1 // loop_header_branch
      %18 = sbr.rel (%p16) target = $region8
    $region5: #{tpu_custom_call.1} parent=1 // loop_body
      %s20 = ssub.s32 %s15, 1
      %s21 = ssub.s32 %s15, 2
      %s28 = sadd.s32 1, %s23
      %p29 = scmp.ge.s32.totalorder %s28, 2
      %s30 = scalar_select %p29, 0, %s28
      %s31 = sadd.s32 1, %s22
      %s32 = scalar_select %p29, %s31, %s22
      %p33 = scmp.ge.s32.totalorder %s32, 2
      %s34 = scalar_select %p33, 0, %s32
      %s35 = ssub.s32 %s22, %s34
      %s36 = ssub.s32 %s23, %s30
      %s37 = sor.u32 %s35, %s36
      %p38 = scmp.eq.s32.totalorder %s37, 0
      %s40 = sadd.s32 %s39, 1
      %s41 = scalar_select %p38, %s39, %s40
      %p44 = pneg %p38
      %p45 = scmp.eq.s32.totalorder %s15, 3
      %p46 = por %p44, %p45
      %p47 = scmp.ne.s32.totalorder %s39, %s42
      %p48 = scmp.eq.s32.totalorder %s15, 0
      %p49 = por %p47, %p48
      %p50 = scmp.ne.s32.totalorder %s39, %s42
      %p51 = scmp.eq.s32.totalorder %s20, 3
      %p52 = por %p50, %p51
      %p53 = scmp.ne.s32.totalorder %s42, %s43
      %p54 = scmp.eq.s32.totalorder %s20, 0
      %p55 = por %p53, %p54
      %p56 = scmp.ne.s32.totalorder %s42, %s43
      %p57 = scmp.eq.s32.totalorder %s21, 3
      %p58 = por %p56, %p57
      %p60 = scmp.ne.s32.totalorder %s43, %s59
      %p61 = scmp.eq.s32.totalorder %s21, 0
      %p62 = por %p60, %p61
      %s63 = ssub.s32 %s22, %s34
      %p64 = scmp.eq.s32.totalorder %s63, 0
      %s66 = sadd.s32 %s65, 1
      %s67 = scalar_select %p64, %s65, %s66
      %p70 = pneg %p64
      %p71 = scmp.eq.s32.totalorder %s15, 3
      %p72 = por %p70, %p71
      %p73 = scmp.ne.s32.totalorder %s65, %s68
      %p74 = scmp.eq.s32.totalorder %s15, 0
      %p75 = por %p73, %p74
      %p76 = scmp.ne.s32.totalorder %s65, %s68
      %p77 = scmp.eq.s32.totalorder %s20, 3
      %p78 = por %p76, %p77
      %p79 = scmp.ne.s32.totalorder %s68, %s69
      %p80 = scmp.eq.s32.totalorder %s20, 0
      %p81 = por %p79, %p80
      %p82 = scmp.ne.s32.totalorder %s68, %s69
      %p83 = scmp.eq.s32.totalorder %s21, 3
      %p84 = por %p82, %p83
      %p86 = scmp.ne.s32.totalorder %s69, %s85
      %p87 = scmp.eq.s32.totalorder %s21, 0
      %p88 = por %p86, %p87
      %s89 = ssub.s32 %s22, %s34
      %p90 = scmp.eq.s32.totalorder %s89, 0
      %s92 = sadd.s32 %s91, 1
      %s93 = scalar_select %p90, %s91, %s92
      %p96 = pneg %p90
      %p97 = scmp.eq.s32.totalorder %s15, 3
      %p98 = por %p96, %p97
      %p99 = scmp.ne.s32.totalorder %s91, %s94
      %p100 = scmp.eq.s32.totalorder %s15, 0
      %p101 = por %p99, %p100
      %p102 = scmp.ne.s32.totalorder %s91, %s94
      %p103 = scmp.eq.s32.totalorder %s20, 3
      %p104 = por %p102, %p103
      %p105 = scmp.ne.s32.totalorder %s94, %s95
      %p106 = scmp.eq.s32.totalorder %s20, 0
      %p107 = por %p105, %p106
      %p108 = scmp.ne.s32.totalorder %s94, %s95
      %p109 = scmp.eq.s32.totalorder %s21, 3
      %p110 = por %p108, %p109
      %p112 = scmp.ne.s32.totalorder %s95, %s111
      %p113 = scmp.eq.s32.totalorder %s21, 0
      %p114 = por %p112, %p113
      %s116 = sadd.s32 %s115, 1
      %p119 = scmp.eq.s32.totalorder %s15, 3
      %p120 = scmp.ne.s32.totalorder %s115, %s117
      %p121 = scmp.eq.s32.totalorder %s15, 0
      %p122 = por %p120, %p121
      %p123 = scmp.ne.s32.totalorder %s115, %s117
      %p124 = scmp.eq.s32.totalorder %s20, 3
      %p125 = por %p123, %p124
      %p126 = scmp.ne.s32.totalorder %s117, %s118
      %p127 = scmp.eq.s32.totalorder %s20, 0
      %p128 = por %p126, %p127
      %p129 = scmp.ne.s32.totalorder %s117, %s118
      %p130 = scmp.eq.s32.totalorder %s21, 3
      %p131 = por %p129, %p130
      %p133 = scmp.ne.s32.totalorder %s118, %s132
      %p134 = scmp.eq.s32.totalorder %s21, 0
      %p135 = por %p133, %p134
      %s136 = ssub.s32 %s22, %s34
      %p137 = scmp.eq.s32.totalorder %s136, 0
      %s139 = sadd.s32 %s138, 1
      %s140 = scalar_select %p137, %s138, %s139
      %p143 = pneg %p137
      %p144 = scmp.eq.s32.totalorder %s15, 3
      %p145 = por %p143, %p144
      %p146 = scmp.ne.s32.totalorder %s138, %s141
      %p147 = scmp.eq.s32.totalorder %s15, 0
      %p148 = por %p146, %p147
      %p149 = scmp.ne.s32.totalorder %s138, %s141
      %p150 = scmp.eq.s32.totalorder %s20, 3
      %p151 = por %p149, %p150
      %p152 = scmp.ne.s32.totalorder %s141, %s142
      %p153 = scmp.eq.s32.totalorder %s20, 0
      %p154 = por %p152, %p153
      %p155 = scmp.ne.s32.totalorder %s141, %s142
      %p156 = scmp.eq.s32.totalorder %s21, 3
      %p157 = por %p155, %p156
      %p159 = scmp.ne.s32.totalorder %s142, %s158
      %p160 = scmp.eq.s32.totalorder %s21, 0
      %p161 = por %p159, %p160
      %s162 = ssub.s32 %s22, %s34
      %p163 = scmp.eq.s32.totalorder %s162, 0
      %s165 = sadd.s32 %s164, 1
      %s166 = scalar_select %p163, %s164, %s165
      %p169 = pneg %p163
      %p170 = scmp.eq.s32.totalorder %s15, 3
      %p171 = por %p169, %p170
      %p172 = scmp.ne.s32.totalorder %s164, %s167
      %p173 = scmp.eq.s32.totalorder %s15, 0
      %p174 = por %p172, %p173
      %p175 = scmp.ne.s32.totalorder %s164, %s167
      %p176 = scmp.eq.s32.totalorder %s20, 3
      %p177 = por %p175, %p176
      %p178 = scmp.ne.s32.totalorder %s167, %s168
      %p179 = scmp.eq.s32.totalorder %s20, 0
      %p180 = por %p178, %p179
      %p181 = scmp.ne.s32.totalorder %s167, %s168
      %p182 = scmp.eq.s32.totalorder %s21, 3
      %p183 = por %p181, %p182
      %p185 = scmp.ne.s32.totalorder %s168, %s184
      %p186 = scmp.eq.s32.totalorder %s21, 0
      %p187 = por %p185, %p186
      %s188 = ssub.s32 %s22, %s34
      %s189 = ssub.s32 %s23, %s30
      %s190 = sor.u32 %s188, %s189
      %p191 = scmp.eq.s32.totalorder %s190, 0
      %s193 = sadd.s32 %s192, 1
      %s194 = scalar_select %p191, %s192, %s193
      %p197 = pneg %p191
      %p198 = scmp.eq.s32.totalorder %s15, 3
      %p199 = por %p197, %p198
      %p200 = scmp.ne.s32.totalorder %s192, %s195
      %p201 = scmp.eq.s32.totalorder %s15, 0
      %p202 = por %p200, %p201
      %p203 = scmp.ne.s32.totalorder %s192, %s195
      %p204 = scmp.eq.s32.totalorder %s20, 3
      %p205 = por %p203, %p204
      %p206 = scmp.ne.s32.totalorder %s195, %s196
      %p207 = scmp.eq.s32.totalorder %s20, 0
      %p208 = por %p206, %p207
      %p209 = scmp.ne.s32.totalorder %s195, %s196
      %p210 = scmp.eq.s32.totalorder %s21, 3
      %p211 = por %p209, %p210
      %p213 = scmp.ne.s32.totalorder %s196, %s212
      %p214 = scmp.eq.s32.totalorder %s21, 0
      %p215 = por %p213, %p214
      %p216 = scmp.le.s32.totalorder 1, %s15
      %p217 = scmp.lt.s32.totalorder %s15, 5
      %p218 = pnand %p216, %p217
      %p219 = pneg %p218
      // Predicated region
      $region9: #{tpu_custom_call.1} parent=5 // pred_check
        _
      $region10: #{tpu_custom_call.1} parent=5 // pred_check_branch
        %221 = sbr.rel (%p218) target = $region12
      $region11: #{tpu_custom_call.1} parent=5 // pred_region
        %s222 = ssub.s32 %s15, 1
        // Predicated region
        $region13: #{tpu_custom_call.1} parent=11 // pred_check
          %p223 = pneg %p128
        $region14: #{tpu_custom_call.1} parent=11 // pred_check_branch
          %225 = sbr.rel (%p223) target = $region16
        $region15: #{tpu_custom_call.1} parent=11 // pred_region
          _
        $region16: #{tpu_custom_call.1} parent=11 // pred_fallthru
          _
      $region12: #{tpu_custom_call.1} parent=5 // pred_fallthru
        _
      %p226 = scmp.lt.s32.totalorder %s15, 4
      // Predicated region
      $region17: #{tpu_custom_call.1} parent=5 // pred_check
        %p227 = pneg %p226
      $region18: #{tpu_custom_call.1} parent=5 // pred_check_branch
        %229 = sbr.rel (%p227) target = $region20
      $region19: #{tpu_custom_call.1} parent=5 // pred_region
        // Predicated region
        $region21: #{tpu_custom_call.1} parent=19 // pred_check
          %p230 = pneg %p49
        $region22: #{tpu_custom_call.1} parent=19 // pred_check_branch
          %232 = sbr.rel (%p230) target = $region24
        $region23: #{tpu_custom_call.1} parent=19 // pred_region
          %s233 = smul.u32 8, %s23
          %p234 = scmp.lt.s32.totalorder %s22, 1
          %s235 = scalar_select %p234, %s22, 1
          %p236 = scmp.lt.s32.totalorder %s233, 15
          %s237 = scalar_select %p236, %s233, 15
          %s238 = smul.addr %s235, 16
          %s239 = sadd.s32 %s237, %s238
          %s240 = smul.addr %s239, 4
          %s241 = scalar_lea.vmem %s0, %s240
          %s242 = smul.u32 8, %s23
        $region24: #{tpu_custom_call.1} parent=19 // pred_fallthru
          _
        // Predicated region
        $region25: #{tpu_custom_call.1} parent=19 // pred_check
          %p243 = pneg %p75
        $region26: #{tpu_custom_call.1} parent=19 // pred_check_branch
          %245 = sbr.rel (%p243) target = $region28
        $region27: #{tpu_custom_call.1} parent=19 // pred_region
          %p246 = scmp.lt.s32.totalorder %s22, 1
          %s247 = scalar_select %p246, %s22, 1
          %s248 = smul.addr %s247, 4
          %s249 = smul.addr %s248, 8
          %s250 = scalar_lea.vmem %s1, %s249
        $region28: #{tpu_custom_call.1} parent=19 // pred_fallthru
          _
        // Predicated region
        $region29: #{tpu_custom_call.1} parent=19 // pred_check
          %p251 = pneg %p101
        $region30: #{tpu_custom_call.1} parent=19 // pred_check_branch
          %253 = sbr.rel (%p251) target = $region32
        $region31: #{tpu_custom_call.1} parent=19 // pred_region
          %p254 = scmp.lt.s32.totalorder %s22, 1
          %s255 = scalar_select %p254, %s22, 1
          %s256 = smul.addr %s255, 4
          %s257 = smul.addr %s256, 8
          %s258 = scalar_lea.vmem %s2, %s257
        $region32: #{tpu_custom_call.1} parent=19 // pred_fallthru
          _
        // Predicated region
        $region33: #{tpu_custom_call.1} parent=19 // pred_check
          %p259 = pneg %p148
        $region34: #{tpu_custom_call.1} parent=19 // pred_check_branch
          %261 = sbr.rel (%p259) target = $region36
        $region35: #{tpu_custom_call.1} parent=19 // pred_region
          %p262 = scmp.lt.s32.totalorder %s22, 1
          %s263 = scalar_select %p262, %s22, 1
          %s264 = smul.addr %s263, 4
          %s265 = smul.addr %s264, 8
          %s266 = scalar_lea.vmem %s4, %s265
        $region36: #{tpu_custom_call.1} parent=19 // pred_fallthru
          _
        // Predicated region
        $region37: #{tpu_custom_call.1} parent=19 // pred_check
          %p267 = pneg %p174
        $region38: #{tpu_custom_call.1} parent=19 // pred_check_branch
          %269 = sbr.rel (%p267) target = $region40
        $region39: #{tpu_custom_call.1} parent=19 // pred_region
          %p270 = scmp.lt.s32.totalorder %s22, 1
          %s271 = scalar_select %p270, %s22, 1
          %s272 = scalar_lea.vmem %s5, %s271
        $region40: #{tpu_custom_call.1} parent=19 // pred_fallthru
          _
      $region20: #{tpu_custom_call.1} parent=5 // pred_fallthru
        _
      %p273 = scmp.le.s32.totalorder 1, %s15
      %p274 = scmp.lt.s32.totalorder %s15, 5
      %p275 = pnand %p273, %p274
      %p276 = pneg %p275
      // Predicated region
      $region41: #{tpu_custom_call.1} parent=5 // pred_check
        _
      $region42: #{tpu_custom_call.1} parent=5 // pred_check_branch
        %278 = sbr.rel (%p275) target = $region44
      $region43: #{tpu_custom_call.1} parent=5 // pred_region
        %s279 = ssub.s32 %s15, 1
        %s280 = smul.u32 8, %s25
        %p281 = scmp.lt.s32.totalorder %s24, 1
        %s282 = scalar_select %p281, %s24, 1
        %p283 = scmp.lt.s32.totalorder %s280, 15
        %s284 = scalar_select %p283, %s280, 15
        %s285 = smul.addr %s282, 16
        %s286 = sadd.s32 %s284, %s285
        %s287 = smul.addr %s286, 4
        %s288 = scalar_lea.vmem %s0, %s287
        %p289 = pneg %p55
        %p290 = pneg %p52
        %p291 = scmp.lt.s32.totalorder %s24, 1
        %s292 = scalar_select %p291, %s24, 1
        %s293 = smul.addr %s292, 4
        %s294 = smul.addr %s293, 8
        %s295 = scalar_lea.vmem %s1, %s294
        %p296 = pneg %p81
        %p297 = pneg %p78
        %p298 = scmp.lt.s32.totalorder %s24, 1
        %s299 = scalar_select %p298, %s24, 1
        %s300 = smul.addr %s299, 4
        %s301 = smul.addr %s300, 8
        %s302 = scalar_lea.vmem %s2, %s301
        %p303 = pneg %p107
        %p304 = pneg %p104
        %p305 = pneg %p128
        %p306 = pneg %p125
        %p307 = scmp.lt.s32.totalorder %s24, 1
        %s308 = scalar_select %p307, %s24, 1
        %s309 = smul.addr %s308, 4
        %s310 = smul.addr %s309, 8
        %s311 = scalar_lea.vmem %s4, %s310
        %p312 = pneg %p154
        %p313 = pneg %p151
        %p314 = scmp.lt.s32.totalorder %s24, 1
        %s315 = scalar_select %p314, %s24, 1
        %s316 = scalar_lea.vmem %s5, %s315
        %p317 = pneg %p180
        %p318 = pneg %p177
        %p319 = pneg %p208
        %p320 = pneg %p205
        %s321 = sand.u32 %s195, 1
        %s322 = scalar_lea.sflag [#allocation3], %s321
        %s323 = sand.u32 %s195, 1
        %s324 = smul.addr %s323, 8
        %s325 = scalar_lea.vmem [#allocation2], %s324
        %s326 = smul.u32 8, %s25
        %p327 = scmp.lt.s32.totalorder %s24, 1
        %s328 = scalar_select %p327, %s24, 1
        %p329 = scmp.lt.s32.totalorder %s326, 15
        %s330 = scalar_select %p329, %s326, 15
        %s331 = smul.addr %s328, 16
        %s332 = sadd.s32 %s330, %s331
        %s333 = smul.addr %s332, 4
        %s334 = scalar_lea.vmem %s0, %s333
        %s335 = smul.u32 8, %s25
        %p336 = scmp.lt.s32.totalorder %s24, 1
        %s337 = scalar_select %p336, %s24, 1
        %s338 = smul.addr %s337, 4
        %s339 = smul.addr %s338, 8
        %s340 = scalar_lea.vmem %s1, %s339
        %p341 = scmp.lt.s32.totalorder %s24, 1
        %s342 = scalar_select %p341, %s24, 1
        %s343 = smul.addr %s342, 4
        %s344 = smul.addr %s343, 8
        %s345 = scalar_lea.vmem %s2, %s344
        %p346 = scmp.lt.s32.totalorder %s24, 1
        %s347 = scalar_select %p346, %s24, 1
        %s348 = smul.addr %s347, 4
        %s349 = smul.addr %s348, 8
        %s350 = scalar_lea.vmem %s4, %s349
        %p351 = scmp.lt.s32.totalorder %s24, 1
        %s352 = scalar_select %p351, %s24, 1
        %s353 = scalar_lea.vmem %s5, %s352
        %s354 = smul.u32 8, %s25
        %v355 = vld [vmem:[%s334] sm:$0x77]
        %v356 = vld [vmem:[%s334 + $0x8] sm:$0x77]
        %v357 = vld [vmem:[%s334 + $0x10] sm:$0x77]
        %v358 = vld [vmem:[%s334 + $0x18] sm:$0x77]
        %v359 = vld [vmem:[%s350] sm:$0xff]
        %v360 = vld [vmem:[%s350 + $0x8] sm:$0xff]
        %v361 = vld [vmem:[%s350 + $0x10] sm:$0xff]
        %v362 = vld [vmem:[%s350 + $0x18] sm:$0xff]
        %v363 = vld [vmem:[%s340] sm:$0xff]
        %v364 = vld [vmem:[%s340 + $0x8] sm:$0xff]
        %v365 = vld [vmem:[%s340 + $0x10] sm:$0xff]
        %v366 = vld [vmem:[%s340 + $0x18] sm:$0xff]
        %368 = vset.pattern.permute.xlu0 0
        %369 = vperm.xlu0 %368, %v359
        %v370 = vpop.permute.xlu0 %369
        %373 = vset.pattern.permute.xlu0 0
        %374 = vperm.xlu0 %373, %v360
        %v375 = vpop.permute.xlu0 %374
        %378 = vset.pattern.permute.xlu0 0
        %379 = vperm.xlu0 %378, %v361
        %v380 = vpop.permute.xlu0 %379
        %383 = vset.pattern.permute.xlu0 0
        %384 = vperm.xlu0 %383, %v362
        %v385 = vpop.permute.xlu0 %384
        %v391 = vcombine.high %v355, %v355
        %v392 = vcombine.high %v356, %v356
        %v393 = vcombine.high %v357, %v357
        %v394 = vcombine.high %v358, %v358
        %vm395 = vcmask 23552
        %v397 = vsel %vm395, %v363, 0
        %v400 = vsel %vm395, %v364, 0
        %v403 = vsel %vm395, %v365, 0
        %v406 = vsel %vm395, %v366, 0
        %vm408 = vcmask 1042432
        %v409 = vsel %vm408, %v355, 0
        %v411 = vsel %vm408, %v391, 0
        %v413 = vsel %vm408, %v356, 0
        %v415 = vsel %vm408, %v392, 0
        %v417 = vsel %vm408, %v357, 0
        %v419 = vsel %vm408, %v393, 0
        %v421 = vsel %vm408, %v358, 0
        %v423 = vsel %vm408, %v394, 0
        %425 = vmatprep.subr.mxu0 %v411
        %426 = vmatpush1.msra.mxu0 %v409
        %427 = vmatprep.subr.mxu0 0.0
        %428 = vmatpush1.msra.mxu0 0.0
        %429 = vmatprep.subr.mxu0 0.0
        %430 = vmatpush1.msra.mxu0 0.0
        %431 = vmatprep.subr.mxu0 0.0
        %432 = vmatpush1.msra.mxu0 0.0
        %433 = vmatprep.subr.mxu0 0.0
        %434 = vmatpush1.msra.mxu0 0.0
        %435 = vmatprep.subr.mxu0 0.0
        %436 = vmatpush1.msra.mxu0 0.0
        %437 = vmatprep.subr.mxu0 0.0
        %438 = vmatpush1.msra.mxu0 0.0
        %439 = vmatprep.subr.mxu0 0.0
        %440 = vmatpush1.msra.mxu0 0.0
        %441 = vmatprep.subr.mxu0 0.0
        %442 = vmatpush1.msra.mxu0 0.0
        %443 = vmatprep.subr.mxu0 0.0
        %444 = vmatpush1.msra.mxu0 0.0
        %445 = vmatprep.subr.mxu0 0.0
        %446 = vmatpush1.msra.mxu0 0.0
        %447 = vmatprep.subr.mxu0 0.0
        %448 = vmatpush1.msra.mxu0 0.0
        %449 = vmatprep.subr.mxu0 0.0
        %450 = vmatpush1.msra.mxu0 0.0
        %451 = vmatprep.subr.mxu0 0.0
        %452 = vmatpush1.msra.mxu0 0.0
        %453 = vmatprep.subr.mxu0 0.0
        %454 = vmatpush1.msra.mxu0 0.0
        %455 = vmatprep.subr.mxu0 0.0
        %456 = vmatpush1.msra.mxu0 0.0
        %457 = vmatprep.subr.mxu0 0.0
        %458 = vmatpush1.msra.mxu0 0.0
        %459 = vmatprep.subr.mxu0 0.0
        %460 = vmatpush1.msra.mxu0 0.0
        %461 = vmatprep.subr.mxu0 0.0
        %462 = vmatpush1.msra.mxu0 0.0
        %463 = vmatprep.subr.mxu0 0.0
        %464 = vmatpush1.msra.mxu0 0.0
        %465 = vmatprep.subr.mxu0 0.0
        %466 = vmatpush1.msra.mxu0 0.0
        %467 = vmatprep.subr.mxu0 0.0
        %468 = vmatpush1.msra.mxu0 0.0
        %469 = vmatprep.subr.mxu0 0.0
        %470 = vmatpush1.msra.mxu0 0.0
        %471 = vmatprep.subr.mxu0 0.0
        %472 = vmatpush1.msra.mxu0 0.0
        %473 = vmatprep.subr.mxu0 0.0
        %474 = vmatpush1.msra.mxu0 0.0
        %475 = vmatprep.subr.mxu0 0.0
        %476 = vmatpush1.msra.mxu0 0.0
        %477 = vmatprep.subr.mxu0 0.0
        %478 = vmatpush1.msra.mxu0 0.0
        %479 = vmatprep.subr.mxu0 0.0
        %480 = vmatpush1.msra.mxu0 0.0
        %481 = vmatprep.subr.mxu0 0.0
        %482 = vmatpush1.msra.mxu0 0.0
        %483 = vmatprep.subr.mxu0 0.0
        %484 = vmatpush1.msra.mxu0 0.0
        %485 = vmatprep.subr.mxu0 0.0
        %486 = vmatpush1.msra.mxu0 0.0
        %487 = vmatprep.subr.mxu0 0.0
        %488 = vmatpush1.msra.mxu0 0.0
        %489 = vmatprep.mubr.f32.mxu0 0.0
        %490 = vmatmul.mubr.f32.gmra.mrb[0].mxu0 %v397
        %v491 = vpop.f32.mrb[0].mxu0
        %v492 = vadd.f32 %v370, %v491
        %v493 = vpop.f32.mrb[0].mxu0
        %v494 = vadd.f32 %v370, %v493
        %495 = vmatprep.mubr.f32.mxu0 0.0
        %496 = vmatmul.mubr.f32.gmra.mrb[0].mxu0 %v400
        %v497 = vpop.f32.mrb[0].mxu0
        %v498 = vadd.f32 %v375, %v497
        %v499 = vpop.f32.mrb[0].mxu0
        %v500 = vadd.f32 %v375, %v499
        %501 = vmatprep.mubr.f32.mxu0 0.0
        %502 = vmatmul.mubr.f32.gmra.mrb[0].mxu0 %v403
        %v503 = vpop.f32.mrb[0].mxu0
        %v504 = vadd.f32 %v380, %v503
        %v505 = vpop.f32.mrb[0].mxu0
        %v506 = vadd.f32 %v380, %v505
        %507 = vmatprep.mubr.f32.mxu0 0.0
        %508 = vmatmul.mubr.f32.gmra.mrb[0].mxu0 %v406
        %v509 = vpop.f32.mrb[0].mxu0
        %v510 = vadd.f32 %v385, %v509
        %v511 = vpop.f32.mrb[0].mxu0
        %v512 = vadd.f32 %v385, %v511
        %513 = vdwg.mxu0
        %514 = vmatprep.subr.mxu0 %v415
        %515 = vmatpush1.msra.mxu0 %v413
        %516 = vmatprep.subr.mxu0 0.0
        %517 = vmatpush1.msra.mxu0 0.0
        %518 = vmatprep.subr.mxu0 0.0
        %519 = vmatpush1.msra.mxu0 0.0
        %520 = vmatprep.subr.mxu0 0.0
        %521 = vmatpush1.msra.mxu0 0.0
        %522 = vmatprep.subr.mxu0 0.0
        %523 = vmatpush1.msra.mxu0 0.0
        %524 = vmatprep.subr.mxu0 0.0
        %525 = vmatpush1.msra.mxu0 0.0
        %526 = vmatprep.subr.mxu0 0.0
        %527 = vmatpush1.msra.mxu0 0.0
        %528 = vmatprep.subr.mxu0 0.0
        %529 = vmatpush1.msra.mxu0 0.0
        %530 = vmatprep.subr.mxu0 0.0
        %531 = vmatpush1.msra.mxu0 0.0
        %532 = vmatprep.subr.mxu0 0.0
        %533 = vmatpush1.msra.mxu0 0.0
        %534 = vmatprep.subr.mxu0 0.0
        %535 = vmatpush1.msra.mxu0 0.0
        %536 = vmatprep.subr.mxu0 0.0
        %537 = vmatpush1.msra.mxu0 0.0
        %538 = vmatprep.subr.mxu0 0.0
        %539 = vmatpush1.msra.mxu0 0.0
        %540 = vmatprep.subr.mxu0 0.0
        %541 = vmatpush1.msra.mxu0 0.0
        %542 = vmatprep.subr.mxu0 0.0
        %543 = vmatpush1.msra.mxu0 0.0
        %544 = vmatprep.subr.mxu0 0.0
        %545 = vmatpush1.msra.mxu0 0.0
        %546 = vmatprep.subr.mxu0 0.0
        %547 = vmatpush1.msra.mxu0 0.0
        %548 = vmatprep.subr.mxu0 0.0
        %549 = vmatpush1.msra.mxu0 0.0
        %550 = vmatprep.subr.mxu0 0.0
        %551 = vmatpush1.msra.mxu0 0.0
        %552 = vmatprep.subr.mxu0 0.0
        %553 = vmatpush1.msra.mxu0 0.0
        %554 = vmatprep.subr.mxu0 0.0
        %555 = vmatpush1.msra.mxu0 0.0
        %556 = vmatprep.subr.mxu0 0.0
        %557 = vmatpush1.msra.mxu0 0.0
        %558 = vmatprep.subr.mxu0 0.0
        %559 = vmatpush1.msra.mxu0 0.0
        %560 = vmatprep.subr.mxu0 0.0
        %561 = vmatpush1.msra.mxu0 0.0
        %562 = vmatprep.subr.mxu0 0.0
        %563 = vmatpush1.msra.mxu0 0.0
        %564 = vmatprep.subr.mxu0 0.0
        %565 = vmatpush1.msra.mxu0 0.0
        %566 = vmatprep.subr.mxu0 0.0
        %567 = vmatpush1.msra.mxu0 0.0
        %568 = vmatprep.subr.mxu0 0.0
        %569 = vmatpush1.msra.mxu0 0.0
        %570 = vmatprep.subr.mxu0 0.0
        %571 = vmatpush1.msra.mxu0 0.0
        %572 = vmatprep.subr.mxu0 0.0
        %573 = vmatpush1.msra.mxu0 0.0
        %574 = vmatprep.subr.mxu0 0.0
        %575 = vmatpush1.msra.mxu0 0.0
        %576 = vmatprep.subr.mxu0 0.0
        %577 = vmatpush1.msra.mxu0 0.0
        %578 = vmatprep.mubr.f32.mxu0 0.0
        %579 = vmatmul.mubr.f32.gmra.mrb[0].mxu0 %v397
        %v580 = vpop.f32.mrb[0].mxu0
        %v581 = vadd.f32 %v370, %v580
        %v582 = vpop.f32.mrb[0].mxu0
        %v583 = vadd.f32 %v370, %v582
        %584 = vmatprep.mubr.f32.mxu0 0.0
        %585 = vmatmul.mubr.f32.gmra.mrb[0].mxu0 %v400
        %v586 = vpop.f32.mrb[0].mxu0
        %v587 = vadd.f32 %v375, %v586
        %v588 = vpop.f32.mrb[0].mxu0
        %v589 = vadd.f32 %v375, %v588
        %590 = vmatprep.mubr.f32.mxu0 0.0
        %591 = vmatmul.mubr.f32.gmra.mrb[0].mxu0 %v403
        %v592 = vpop.f32.mrb[0].mxu0
        %v593 = vadd.f32 %v380, %v592
        %v594 = vpop.f32.mrb[0].mxu0
        %v595 = vadd.f32 %v380, %v594
        %596 = vmatprep.mubr.f32.mxu0 0.0
        %597 = vmatmul.mubr.f32.gmra.mrb[0].mxu0 %v406
        %v598 = vpop.f32.mrb[0].mxu0
        %v599 = vadd.f32 %v385, %v598
        %v600 = vpop.f32.mrb[0].mxu0
        %v601 = vadd.f32 %v385, %v600
        %602 = vdwg.mxu0
        %603 = vmatprep.subr.mxu0 %v419
        %604 = vmatpush1.msra.mxu0 %v417
        %605 = vmatprep.subr.mxu0 0.0
        %606 = vmatpush1.msra.mxu0 0.0
        %607 = vmatprep.subr.mxu0 0.0
        %608 = vmatpush1.msra.mxu0 0.0
        %609 = vmatprep.subr.mxu0 0.0
        %610 = vmatpush1.msra.mxu0 0.0
        %611 = vmatprep.subr.mxu0 0.0
        %612 = vmatpush1.msra.mxu0 0.0
        %613 = vmatprep.subr.mxu0 0.0
        %614 = vmatpush1.msra.mxu0 0.0
        %615 = vmatprep.subr.mxu0 0.0
        %616 = vmatpush1.msra.mxu0 0.0
        %617 = vmatprep.subr.mxu0 0.0
        %618 = vmatpush1.msra.mxu0 0.0
        %619 = vmatprep.subr.mxu0 0.0
        %620 = vmatpush1.msra.mxu0 0.0
        %621 = vmatprep.subr.mxu0 0.0
        %622 = vmatpush1.msra.mxu0 0.0
        %623 = vmatprep.subr.mxu0 0.0
        %624 = vmatpush1.msra.mxu0 0.0
        %625 = vmatprep.subr.mxu0 0.0
        %626 = vmatpush1.msra.mxu0 0.0
        %627 = vmatprep.subr.mxu0 0.0
        %628 = vmatpush1.msra.mxu0 0.0
        %629 = vmatprep.subr.mxu0 0.0
        %630 = vmatpush1.msra.mxu0 0.0
        %631 = vmatprep.subr.mxu0 0.0
        %632 = vmatpush1.msra.mxu0 0.0
        %633 = vmatprep.subr.mxu0 0.0
        %634 = vmatpush1.msra.mxu0 0.0
        %635 = vmatprep.subr.mxu0 0.0
        %636 = vmatpush1.msra.mxu0 0.0
        %637 = vmatprep.subr.mxu0 0.0
        %638 = vmatpush1.msra.mxu0 0.0
        %639 = vmatprep.subr.mxu0 0.0
        %640 = vmatpush1.msra.mxu0 0.0
        %641 = vmatprep.subr.mxu0 0.0
        %642 = vmatpush1.msra.mxu0 0.0
        %643 = vmatprep.subr.mxu0 0.0
        %644 = vmatpush1.msra.mxu0 0.0
        %645 = vmatprep.subr.mxu0 0.0
        %646 = vmatpush1.msra.mxu0 0.0
        %647 = vmatprep.subr.mxu0 0.0
        %648 = vmatpush1.msra.mxu0 0.0
        %649 = vmatprep.subr.mxu0 0.0
        %650 = vmatpush1.msra.mxu0 0.0
        %651 = vmatprep.subr.mxu0 0.0
        %652 = vmatpush1.msra.mxu0 0.0
        %653 = vmatprep.subr.mxu0 0.0
        %654 = vmatpush1.msra.mxu0 0.0
        %655 = vmatprep.subr.mxu0 0.0
        %656 = vmatpush1.msra.mxu0 0.0
        %657 = vmatprep.subr.mxu0 0.0
        %658 = vmatpush1.msra.mxu0 0.0
        %659 = vmatprep.subr.mxu0 0.0
        %660 = vmatpush1.msra.mxu0 0.0
        %661 = vmatprep.subr.mxu0 0.0
        %662 = vmatpush1.msra.mxu0 0.0
        %663 = vmatprep.subr.mxu0 0.0
        %664 = vmatpush1.msra.mxu0 0.0
        %665 = vmatprep.subr.mxu0 0.0
        %666 = vmatpush1.msra.mxu0 0.0
        %667 = vmatprep.mubr.f32.mxu0 0.0
        %668 = vmatmul.mubr.f32.gmra.mrb[0].mxu0 %v397
        %v669 = vpop.f32.mrb[0].mxu0
        %v670 = vadd.f32 %v370, %v669
        %v671 = vpop.f32.mrb[0].mxu0
        %v672 = vadd.f32 %v370, %v671
        %673 = vmatprep.mubr.f32.mxu0 0.0
        %674 = vmatmul.mubr.f32.gmra.mrb[0].mxu0 %v400
        %v675 = vpop.f32.mrb[0].mxu0
        %v676 = vadd.f32 %v375, %v675
        %v677 = vpop.f32.mrb[0].mxu0
        %v678 = vadd.f32 %v375, %v677
        %679 = vmatprep.mubr.f32.mxu0 0.0
        %680 = vmatmul.mubr.f32.gmra.mrb[0].mxu0 %v403
        %v681 = vpop.f32.mrb[0].mxu0
        %v682 = vadd.f32 %v380, %v681
        %v683 = vpop.f32.mrb[0].mxu0
        %v684 = vadd.f32 %v380, %v683
        %685 = vmatprep.mubr.f32.mxu0 0.0
        %686 = vmatmul.mubr.f32.gmra.mrb[0].mxu0 %v406
        %v687 = vpop.f32.mrb[0].mxu0
        %v688 = vadd.f32 %v385, %v687
        %v689 = vpop.f32.mrb[0].mxu0
        %v690 = vadd.f32 %v385, %v689
        %691 = vdwg.mxu0
        %692 = vmatprep.subr.mxu0 %v423
        %693 = vmatpush1.msra.mxu0 %v421
        %694 = vmatprep.subr.mxu0 0.0
        %695 = vmatpush1.msra.mxu0 0.0
        %696 = vmatprep.subr.mxu0 0.0
        %697 = vmatpush1.msra.mxu0 0.0
        %698 = vmatprep.subr.mxu0 0.0
        %699 = vmatpush1.msra.mxu0 0.0
        %700 = vmatprep.subr.mxu0 0.0
        %701 = vmatpush1.msra.mxu0 0.0
        %702 = vmatprep.subr.mxu0 0.0
        %703 = vmatpush1.msra.mxu0 0.0
        %704 = vmatprep.subr.mxu0 0.0
        %705 = vmatpush1.msra.mxu0 0.0
        %706 = vmatprep.subr.mxu0 0.0
        %707 = vmatpush1.msra.mxu0 0.0
        %708 = vmatprep.subr.mxu0 0.0
        %709 = vmatpush1.msra.mxu0 0.0
        %710 = vmatprep.subr.mxu0 0.0
        %711 = vmatpush1.msra.mxu0 0.0
        %712 = vmatprep.subr.mxu0 0.0
        %713 = vmatpush1.msra.mxu0 0.0
        %714 = vmatprep.subr.mxu0 0.0
        %715 = vmatpush1.msra.mxu0 0.0
        %716 = vmatprep.subr.mxu0 0.0
        %717 = vmatpush1.msra.mxu0 0.0
        %718 = vmatprep.subr.mxu0 0.0
        %719 = vmatpush1.msra.mxu0 0.0
        %720 = vmatprep.subr.mxu0 0.0
        %721 = vmatpush1.msra.mxu0 0.0
        %722 = vmatprep.subr.mxu0 0.0
        %723 = vmatpush1.msra.mxu0 0.0
        %724 = vmatprep.subr.mxu0 0.0
        %725 = vmatpush1.msra.mxu0 0.0
        %726 = vmatprep.subr.mxu0 0.0
        %727 = vmatpush1.msra.mxu0 0.0
        %728 = vmatprep.subr.mxu0 0.0
        %729 = vmatpush1.msra.mxu0 0.0
        %730 = vmatprep.subr.mxu0 0.0
        %731 = vmatpush1.msra.mxu0 0.0
        %732 = vmatprep.subr.mxu0 0.0
        %733 = vmatpush1.msra.mxu0 0.0
        %734 = vmatprep.subr.mxu0 0.0
        %735 = vmatpush1.msra.mxu0 0.0
        %736 = vmatprep.subr.mxu0 0.0
        %737 = vmatpush1.msra.mxu0 0.0
        %738 = vmatprep.subr.mxu0 0.0
        %739 = vmatpush1.msra.mxu0 0.0
        %740 = vmatprep.subr.mxu0 0.0
        %741 = vmatpush1.msra.mxu0 0.0
        %742 = vmatprep.subr.mxu0 0.0
        %743 = vmatpush1.msra.mxu0 0.0
        %744 = vmatprep.subr.mxu0 0.0
        %745 = vmatpush1.msra.mxu0 0.0
        %746 = vmatprep.subr.mxu0 0.0
        %747 = vmatpush1.msra.mxu0 0.0
        %748 = vmatprep.subr.mxu0 0.0
        %749 = vmatpush1.msra.mxu0 0.0
        %750 = vmatprep.subr.mxu0 0.0
        %751 = vmatpush1.msra.mxu0 0.0
        %752 = vmatprep.subr.mxu0 0.0
        %753 = vmatpush1.msra.mxu0 0.0
        %754 = vmatprep.subr.mxu0 0.0
        %755 = vmatpush1.msra.mxu0 0.0
        %756 = vmatprep.mubr.f32.mxu0 0.0
        %757 = vmatmul.mubr.f32.gmra.mrb[0].mxu0 %v397
        %v758 = vpop.f32.mrb[0].mxu0
        %v759 = vadd.f32 %v370, %v758
        %v760 = vpop.f32.mrb[0].mxu0
        %v761 = vadd.f32 %v370, %v760
        %762 = vmatprep.mubr.f32.mxu0 0.0
        %763 = vmatmul.mubr.f32.gmra.mrb[0].mxu0 %v400
        %v764 = vpop.f32.mrb[0].mxu0
        %v765 = vadd.f32 %v375, %v764
        %v766 = vpop.f32.mrb[0].mxu0
        %v767 = vadd.f32 %v375, %v766
        %768 = vmatprep.mubr.f32.mxu0 0.0
        %769 = vmatmul.mubr.f32.gmra.mrb[0].mxu0 %v403
        %v770 = vpop.f32.mrb[0].mxu0
        %v771 = vadd.f32 %v380, %v770
        %v772 = vpop.f32.mrb[0].mxu0
        %v773 = vadd.f32 %v380, %v772
        %774 = vmatprep.mubr.f32.mxu0 0.0
        %775 = vmatmul.mubr.f32.gmra.mrb[0].mxu0 %v406
        %v776 = vpop.f32.mrb[0].mxu0
        %v777 = vadd.f32 %v385, %v776
        %v778 = vpop.f32.mrb[0].mxu0
        %v779 = vadd.f32 %v385, %v778
        %780 = vdwg.mxu0
        %v781 = vmax.f32 %v492, 0.0
        %v782 = vmax.f32 %v494, 0.0
        %v783 = vmax.f32 %v581, 0.0
        %v784 = vmax.f32 %v583, 0.0
        %v785 = vmax.f32 %v670, 0.0
        %v786 = vmax.f32 %v672, 0.0
        %v787 = vmax.f32 %v759, 0.0
        %v788 = vmax.f32 %v761, 0.0
        %v789 = vmax.f32 %v498, 0.0
        %v790 = vmax.f32 %v500, 0.0
        %v791 = vmax.f32 %v587, 0.0
        %v792 = vmax.f32 %v589, 0.0
        %v793 = vmax.f32 %v676, 0.0
        %v794 = vmax.f32 %v678, 0.0
        %v795 = vmax.f32 %v765, 0.0
        %v796 = vmax.f32 %v767, 0.0
        %v797 = vmax.f32 %v504, 0.0
        %v798 = vmax.f32 %v506, 0.0
        %v799 = vmax.f32 %v593, 0.0
        %v800 = vmax.f32 %v595, 0.0
        %v801 = vmax.f32 %v682, 0.0
        %v802 = vmax.f32 %v684, 0.0
        %v803 = vmax.f32 %v771, 0.0
        %v804 = vmax.f32 %v773, 0.0
        %v805 = vmax.f32 %v510, 0.0
        %v806 = vmax.f32 %v512, 0.0
        %v807 = vmax.f32 %v599, 0.0
        %v808 = vmax.f32 %v601, 0.0
        %v809 = vmax.f32 %v688, 0.0
        %v810 = vmax.f32 %v690, 0.0
        %v811 = vmax.f32 %v777, 0.0
        %v812 = vmax.f32 %v779, 0.0
        %v813 = vld [vmem:[%s345] sm:$0xff]
        %v814 = vld [vmem:[%s345 + $0x8] sm:$0xff]
        %v815 = vld [vmem:[%s345 + $0x10] sm:$0xff]
        %v816 = vld [vmem:[%s345 + $0x18] sm:$0xff]
        %817 = vset.pattern.permute.xlu0 1
        %818 = vperm.xlu0 %817, %v359
        %v819 = vpop.permute.xlu0 %818
        %821 = vset.pattern.permute.xlu0 1
        %822 = vperm.xlu0 %821, %v360
        %v823 = vpop.permute.xlu0 %822
        %825 = vset.pattern.permute.xlu0 1
        %826 = vperm.xlu0 %825, %v361
        %v827 = vpop.permute.xlu0 %826
        %829 = vset.pattern.permute.xlu0 1
        %830 = vperm.xlu0 %829, %v362
        %v831 = vpop.permute.xlu0 %830
        %vm833 = vcmask 261120
        %v835 = vsel %vm833, %v813, 0
        %v838 = vsel %vm833, %v814, 0
        %v841 = vsel %vm833, %v815, 0
        %v844 = vsel %vm833, %v816, 0
        %846 = vmatprep.subr.mxu0 %v782
        %847 = vmatpush1.msra.mxu0 %v781
        %848 = vmatprep.subr.mxu0 %v790
        %849 = vmatpush1.msra.mxu0 %v789
        %850 = vmatprep.subr.mxu0 %v798
        %851 = vmatpush1.msra.mxu0 %v797
        %852 = vmatprep.subr.mxu0 %v806
        %853 = vmatpush1.msra.mxu0 %v805
        %854 = vmatprep.subr.mxu0 0.0
        %855 = vmatpush1.msra.mxu0 0.0
        %856 = vmatprep.subr.mxu0 0.0
        %857 = vmatpush1.msra.mxu0 0.0
        %858 = vmatprep.subr.mxu0 0.0
        %859 = vmatpush1.msra.mxu0 0.0
        %860 = vmatprep.subr.mxu0 0.0
        %861 = vmatpush1.msra.mxu0 0.0
        %862 = vmatprep.subr.mxu0 0.0
        %863 = vmatpush1.msra.mxu0 0.0
        %864 = vmatprep.subr.mxu0 0.0
        %865 = vmatpush1.msra.mxu0 0.0
        %866 = vmatprep.subr.mxu0 0.0
        %867 = vmatpush1.msra.mxu0 0.0
        %868 = vmatprep.subr.mxu0 0.0
        %869 = vmatpush1.msra.mxu0 0.0
        %870 = vmatprep.subr.mxu0 0.0
        %871 = vmatpush1.msra.mxu0 0.0
        %872 = vmatprep.subr.mxu0 0.0
        %873 = vmatpush1.msra.mxu0 0.0
        %874 = vmatprep.subr.mxu0 0.0
        %875 = vmatpush1.msra.mxu0 0.0
        %876 = vmatprep.subr.mxu0 0.0
        %877 = vmatpush1.msra.mxu0 0.0
        %878 = vmatprep.subr.mxu0 0.0
        %879 = vmatpush1.msra.mxu0 0.0
        %880 = vmatprep.subr.mxu0 0.0
        %881 = vmatpush1.msra.mxu0 0.0
        %882 = vmatprep.subr.mxu0 0.0
        %883 = vmatpush1.msra.mxu0 0.0
        %884 = vmatprep.subr.mxu0 0.0
        %885 = vmatpush1.msra.mxu0 0.0
        %886 = vmatprep.subr.mxu0 0.0
        %887 = vmatpush1.msra.mxu0 0.0
        %888 = vmatprep.subr.mxu0 0.0
        %889 = vmatpush1.msra.mxu0 0.0
        %890 = vmatprep.subr.mxu0 0.0
        %891 = vmatpush1.msra.mxu0 0.0
        %892 = vmatprep.subr.mxu0 0.0
        %893 = vmatpush1.msra.mxu0 0.0
        %894 = vmatprep.subr.mxu0 0.0
        %895 = vmatpush1.msra.mxu0 0.0
        %896 = vmatprep.subr.mxu0 0.0
        %897 = vmatpush1.msra.mxu0 0.0
        %898 = vmatprep.subr.mxu0 0.0
        %899 = vmatpush1.msra.mxu0 0.0
        %900 = vmatprep.subr.mxu0 0.0
        %901 = vmatpush1.msra.mxu0 0.0
        %902 = vmatprep.subr.mxu0 0.0
        %903 = vmatpush1.msra.mxu0 0.0
        %904 = vmatprep.subr.mxu0 0.0
        %905 = vmatpush1.msra.mxu0 0.0
        %906 = vmatprep.subr.mxu0 0.0
        %907 = vmatpush1.msra.mxu0 0.0
        %908 = vmatprep.subr.mxu0 0.0
        %909 = vmatpush1.msra.mxu0 0.0
        %910 = vmatprep.mubr.f32.mxu0 0.0
        %911 = vmatmul.mubr.f32.gmra.mrb[0].mxu0 %v835
        %v912 = vpop.f32.mrb[0].mxu0
        %v913 = vadd.f32 %v819, %v912
        %v914 = vpop.f32.mrb[0].mxu0
        %v915 = vadd.f32 %v819, %v914
        %916 = vmatprep.mubr.f32.mxu0 0.0
        %917 = vmatmul.mubr.f32.gmra.mrb[0].mxu0 %v838
        %v918 = vpop.f32.mrb[0].mxu0
        %v919 = vadd.f32 %v823, %v918
        %v920 = vpop.f32.mrb[0].mxu0
        %v921 = vadd.f32 %v823, %v920
        %922 = vmatprep.mubr.f32.mxu0 0.0
        %923 = vmatmul.mubr.f32.gmra.mrb[0].mxu0 %v841
        %v924 = vpop.f32.mrb[0].mxu0
        %v925 = vadd.f32 %v827, %v924
        %v926 = vpop.f32.mrb[0].mxu0
        %v927 = vadd.f32 %v827, %v926
        %928 = vmatprep.mubr.f32.mxu0 0.0
        %929 = vmatmul.mubr.f32.gmra.mrb[0].mxu0 %v844
        %v930 = vpop.f32.mrb[0].mxu0
        %v931 = vadd.f32 %v831, %v930
        %v932 = vpop.f32.mrb[0].mxu0
        %v933 = vadd.f32 %v831, %v932
        %934 = vdwg.mxu0
        %935 = vmatprep.subr.mxu0 %v784
        %936 = vmatpush1.msra.mxu0 %v783
        %937 = vmatprep.subr.mxu0 %v792
        %938 = vmatpush1.msra.mxu0 %v791
        %939 = vmatprep.subr.mxu0 %v800
        %940 = vmatpush1.msra.mxu0 %v799
        %941 = vmatprep.subr.mxu0 %v808
        %942 = vmatpush1.msra.mxu0 %v807
        %943 = vmatprep.subr.mxu0 0.0
        %944 = vmatpush1.msra.mxu0 0.0
        %945 = vmatprep.subr.mxu0 0.0
        %946 = vmatpush1.msra.mxu0 0.0
        %947 = vmatprep.subr.mxu0 0.0
        %948 = vmatpush1.msra.mxu0 0.0
        %949 = vmatprep.subr.mxu0 0.0
        %950 = vmatpush1.msra.mxu0 0.0
        %951 = vmatprep.subr.mxu0 0.0
        %952 = vmatpush1.msra.mxu0 0.0
        %953 = vmatprep.subr.mxu0 0.0
        %954 = vmatpush1.msra.mxu0 0.0
        %955 = vmatprep.subr.mxu0 0.0
        %956 = vmatpush1.msra.mxu0 0.0
        %957 = vmatprep.subr.mxu0 0.0
        %958 = vmatpush1.msra.mxu0 0.0
        %959 = vmatprep.subr.mxu0 0.0
        %960 = vmatpush1.msra.mxu0 0.0
        %961 = vmatprep.subr.mxu0 0.0
        %962 = vmatpush1.msra.mxu0 0.0
        %963 = vmatprep.subr.mxu0 0.0
        %964 = vmatpush1.msra.mxu0 0.0
        %965 = vmatprep.subr.mxu0 0.0
        %966 = vmatpush1.msra.mxu0 0.0
        %967 = vmatprep.subr.mxu0 0.0
        %968 = vmatpush1.msra.mxu0 0.0
        %969 = vmatprep.subr.mxu0 0.0
        %970 = vmatpush1.msra.mxu0 0.0
        %971 = vmatprep.subr.mxu0 0.0
        %972 = vmatpush1.msra.mxu0 0.0
        %973 = vmatprep.subr.mxu0 0.0
        %974 = vmatpush1.msra.mxu0 0.0
        %975 = vmatprep.subr.mxu0 0.0
        %976 = vmatpush1.msra.mxu0 0.0
        %977 = vmatprep.subr.mxu0 0.0
        %978 = vmatpush1.msra.mxu0 0.0
        %979 = vmatprep.subr.mxu0 0.0
        %980 = vmatpush1.msra.mxu0 0.0
        %981 = vmatprep.subr.mxu0 0.0
        %982 = vmatpush1.msra.mxu0 0.0
        %983 = vmatprep.subr.mxu0 0.0
        %984 = vmatpush1.msra.mxu0 0.0
        %985 = vmatprep.subr.mxu0 0.0
        %986 = vmatpush1.msra.mxu0 0.0
        %987 = vmatprep.subr.mxu0 0.0
        %988 = vmatpush1.msra.mxu0 0.0
        %989 = vmatprep.subr.mxu0 0.0
        %990 = vmatpush1.msra.mxu0 0.0
        %991 = vmatprep.subr.mxu0 0.0
        %992 = vmatpush1.msra.mxu0 0.0
        %993 = vmatprep.subr.mxu0 0.0
        %994 = vmatpush1.msra.mxu0 0.0
        %995 = vmatprep.subr.mxu0 0.0
        %996 = vmatpush1.msra.mxu0 0.0
        %997 = vmatprep.subr.mxu0 0.0
        %998 = vmatpush1.msra.mxu0 0.0
        %999 = vmatprep.mubr.f32.mxu0 0.0
        %1000 = vmatmul.mubr.f32.gmra.mrb[0].mxu0 %v835
        %v1001 = vpop.f32.mrb[0].mxu0
        %v1002 = vadd.f32 %v819, %v1001
        %v1003 = vpop.f32.mrb[0].mxu0
        %v1004 = vadd.f32 %v819, %v1003
        %1005 = vmatprep.mubr.f32.mxu0 0.0
        %1006 = vmatmul.mubr.f32.gmra.mrb[0].mxu0 %v838
        %v1007 = vpop.f32.mrb[0].mxu0
        %v1008 = vadd.f32 %v823, %v1007
        %v1009 = vpop.f32.mrb[0].mxu0
        %v1010 = vadd.f32 %v823, %v1009
        %1011 = vmatprep.mubr.f32.mxu0 0.0
        %1012 = vmatmul.mubr.f32.gmra.mrb[0].mxu0 %v841
        %v1013 = vpop.f32.mrb[0].mxu0
        %v1014 = vadd.f32 %v827, %v1013
        %v1015 = vpop.f32.mrb[0].mxu0
        %v1016 = vadd.f32 %v827, %v1015
        %1017 = vmatprep.mubr.f32.mxu0 0.0
        %1018 = vmatmul.mubr.f32.gmra.mrb[0].mxu0 %v844
        %v1019 = vpop.f32.mrb[0].mxu0
        %v1020 = vadd.f32 %v831, %v1019
        %v1021 = vpop.f32.mrb[0].mxu0
        %v1022 = vadd.f32 %v831, %v1021
        %1023 = vdwg.mxu0
        %1024 = vmatprep.subr.mxu0 %v786
        %1025 = vmatpush1.msra.mxu0 %v785
        %1026 = vmatprep.subr.mxu0 %v794
        %1027 = vmatpush1.msra.mxu0 %v793
        %1028 = vmatprep.subr.mxu0 %v802
        %1029 = vmatpush1.msra.mxu0 %v801
        %1030 = vmatprep.subr.mxu0 %v810
        %1031 = vmatpush1.msra.mxu0 %v809
        %1032 = vmatprep.subr.mxu0 0.0
        %1033 = vmatpush1.msra.mxu0 0.0
        %1034 = vmatprep.subr.mxu0 0.0
        %1035 = vmatpush1.msra.mxu0 0.0
        %1036 = vmatprep.subr.mxu0 0.0
        %1037 = vmatpush1.msra.mxu0 0.0
        %1038 = vmatprep.subr.mxu0 0.0
        %1039 = vmatpush1.msra.mxu0 0.0
        %1040 = vmatprep.subr.mxu0 0.0
        %1041 = vmatpush1.msra.mxu0 0.0
        %1042 = vmatprep.subr.mxu0 0.0
        %1043 = vmatpush1.msra.mxu0 0.0
        %1044 = vmatprep.subr.mxu0 0.0
        %1045 = vmatpush1.msra.mxu0 0.0
        %1046 = vmatprep.subr.mxu0 0.0
        %1047 = vmatpush1.msra.mxu0 0.0
        %1048 = vmatprep.subr.mxu0 0.0
        %1049 = vmatpush1.msra.mxu0 0.0
        %1050 = vmatprep.subr.mxu0 0.0
        %1051 = vmatpush1.msra.mxu0 0.0
        %1052 = vmatprep.subr.mxu0 0.0
        %1053 = vmatpush1.msra.mxu0 0.0
        %1054 = vmatprep.subr.mxu0 0.0
        %1055 = vmatpush1.msra.mxu0 0.0
        %1056 = vmatprep.subr.mxu0 0.0
        %1057 = vmatpush1.msra.mxu0 0.0
        %1058 = vmatprep.subr.mxu0 0.0
        %1059 = vmatpush1.msra.mxu0 0.0
        %1060 = vmatprep.subr.mxu0 0.0
        %1061 = vmatpush1.msra.mxu0 0.0
        %1062 = vmatprep.subr.mxu0 0.0
        %1063 = vmatpush1.msra.mxu0 0.0
        %1064 = vmatprep.subr.mxu0 0.0
        %1065 = vmatpush1.msra.mxu0 0.0
        %1066 = vmatprep.subr.mxu0 0.0
        %1067 = vmatpush1.msra.mxu0 0.0
        %1068 = vmatprep.subr.mxu0 0.0
        %1069 = vmatpush1.msra.mxu0 0.0
        %1070 = vmatprep.subr.mxu0 0.0
        %1071 = vmatpush1.msra.mxu0 0.0
        %1072 = vmatprep.subr.mxu0 0.0
        %1073 = vmatpush1.msra.mxu0 0.0
        %1074 = vmatprep.subr.mxu0 0.0
        %1075 = vmatpush1.msra.mxu0 0.0
        %1076 = vmatprep.subr.mxu0 0.0
        %1077 = vmatpush1.msra.mxu0 0.0
        %1078 = vmatprep.subr.mxu0 0.0
        %1079 = vmatpush1.msra.mxu0 0.0
        %1080 = vmatprep.subr.mxu0 0.0
        %1081 = vmatpush1.msra.mxu0 0.0
        %1082 = vmatprep.subr.mxu0 0.0
        %1083 = vmatpush1.msra.mxu0 0.0
        %1084 = vmatprep.subr.mxu0 0.0
        %1085 = vmatpush1.msra.mxu0 0.0
        %1086 = vmatprep.subr.mxu0 0.0
        %1087 = vmatpush1.msra.mxu0 0.0
        %1088 = vmatprep.mubr.f32.mxu0 0.0
        %1089 = vmatmul.mubr.f32.gmra.mrb[0].mxu0 %v835
        %v1090 = vpop.f32.mrb[0].mxu0
        %v1091 = vadd.f32 %v819, %v1090
        %v1092 = vpop.f32.mrb[0].mxu0
        %v1093 = vadd.f32 %v819, %v1092
        %1094 = vmatprep.mubr.f32.mxu0 0.0
        %1095 = vmatmul.mubr.f32.gmra.mrb[0].mxu0 %v838
        %v1096 = vpop.f32.mrb[0].mxu0
        %v1097 = vadd.f32 %v823, %v1096
        %v1098 = vpop.f32.mrb[0].mxu0
        %v1099 = vadd.f32 %v823, %v1098
        %1100 = vmatprep.mubr.f32.mxu0 0.0
        %1101 = vmatmul.mubr.f32.gmra.mrb[0].mxu0 %v841
        %v1102 = vpop.f32.mrb[0].mxu0
        %v1103 = vadd.f32 %v827, %v1102
        %v1104 = vpop.f32.mrb[0].mxu0
        %v1105 = vadd.f32 %v827, %v1104
        %1106 = vmatprep.mubr.f32.mxu0 0.0
        %1107 = vmatmul.mubr.f32.gmra.mrb[0].mxu0 %v844
        %v1108 = vpop.f32.mrb[0].mxu0
        %v1109 = vadd.f32 %v831, %v1108
        %v1110 = vpop.f32.mrb[0].mxu0
        %v1111 = vadd.f32 %v831, %v1110
        %1112 = vdwg.mxu0
        %1113 = vmatprep.subr.mxu0 %v788
        %1114 = vmatpush1.msra.mxu0 %v787
        %1115 = vmatprep.subr.mxu0 %v796
        %1116 = vmatpush1.msra.mxu0 %v795
        %1117 = vmatprep.subr.mxu0 %v804
        %1118 = vmatpush1.msra.mxu0 %v803
        %1119 = vmatprep.subr.mxu0 %v812
        %1120 = vmatpush1.msra.mxu0 %v811
        %1121 = vmatprep.subr.mxu0 0.0
        %1122 = vmatpush1.msra.mxu0 0.0
        %1123 = vmatprep.subr.mxu0 0.0
        %1124 = vmatpush1.msra.mxu0 0.0
        %1125 = vmatprep.subr.mxu0 0.0
        %1126 = vmatpush1.msra.mxu0 0.0
        %1127 = vmatprep.subr.mxu0 0.0
        %1128 = vmatpush1.msra.mxu0 0.0
        %1129 = vmatprep.subr.mxu0 0.0
        %1130 = vmatpush1.msra.mxu0 0.0
        %1131 = vmatprep.subr.mxu0 0.0
        %1132 = vmatpush1.msra.mxu0 0.0
        %1133 = vmatprep.subr.mxu0 0.0
        %1134 = vmatpush1.msra.mxu0 0.0
        %1135 = vmatprep.subr.mxu0 0.0
        %1136 = vmatpush1.msra.mxu0 0.0
        %1137 = vmatprep.subr.mxu0 0.0
        %1138 = vmatpush1.msra.mxu0 0.0
        %1139 = vmatprep.subr.mxu0 0.0
        %1140 = vmatpush1.msra.mxu0 0.0
        %1141 = vmatprep.subr.mxu0 0.0
        %1142 = vmatpush1.msra.mxu0 0.0
        %1143 = vmatprep.subr.mxu0 0.0
        %1144 = vmatpush1.msra.mxu0 0.0
        %1145 = vmatprep.subr.mxu0 0.0
        %1146 = vmatpush1.msra.mxu0 0.0
        %1147 = vmatprep.subr.mxu0 0.0
        %1148 = vmatpush1.msra.mxu0 0.0
        %1149 = vmatprep.subr.mxu0 0.0
        %1150 = vmatpush1.msra.mxu0 0.0
        %1151 = vmatprep.subr.mxu0 0.0
        %1152 = vmatpush1.msra.mxu0 0.0
        %1153 = vmatprep.subr.mxu0 0.0
        %1154 = vmatpush1.msra.mxu0 0.0
        %1155 = vmatprep.subr.mxu0 0.0
        %1156 = vmatpush1.msra.mxu0 0.0
        %1157 = vmatprep.subr.mxu0 0.0
        %1158 = vmatpush1.msra.mxu0 0.0
        %1159 = vmatprep.subr.mxu0 0.0
        %1160 = vmatpush1.msra.mxu0 0.0
        %1161 = vmatprep.subr.mxu0 0.0
        %1162 = vmatpush1.msra.mxu0 0.0
        %1163 = vmatprep.subr.mxu0 0.0
        %1164 = vmatpush1.msra.mxu0 0.0
        %1165 = vmatprep.subr.mxu0 0.0
        %1166 = vmatpush1.msra.mxu0 0.0
        %1167 = vmatprep.subr.mxu0 0.0
        %1168 = vmatpush1.msra.mxu0 0.0
        %1169 = vmatprep.subr.mxu0 0.0
        %1170 = vmatpush1.msra.mxu0 0.0
        %1171 = vmatprep.subr.mxu0 0.0
        %1172 = vmatpush1.msra.mxu0 0.0
        %1173 = vmatprep.subr.mxu0 0.0
        %1174 = vmatpush1.msra.mxu0 0.0
        %1175 = vmatprep.subr.mxu0 0.0
        %1176 = vmatpush1.msra.mxu0 0.0
        %1177 = vmatprep.mubr.f32.mxu0 0.0
        %1178 = vmatmul.mubr.f32.gmra.mrb[0].mxu0 %v835
        %v1179 = vpop.f32.mrb[0].mxu0
        %v1180 = vadd.f32 %v819, %v1179
        %v1181 = vpop.f32.mrb[0].mxu0
        %v1182 = vadd.f32 %v819, %v1181
        %1183 = vmatprep.mubr.f32.mxu0 0.0
        %1184 = vmatmul.mubr.f32.gmra.mrb[0].mxu0 %v838
        %v1185 = vpop.f32.mrb[0].mxu0
        %v1186 = vadd.f32 %v823, %v1185
        %v1187 = vpop.f32.mrb[0].mxu0
        %v1188 = vadd.f32 %v823, %v1187
        %1189 = vmatprep.mubr.f32.mxu0 0.0
        %1190 = vmatmul.mubr.f32.gmra.mrb[0].mxu0 %v841
        %v1191 = vpop.f32.mrb[0].mxu0
        %v1192 = vadd.f32 %v827, %v1191
        %v1193 = vpop.f32.mrb[0].mxu0
        %v1194 = vadd.f32 %v827, %v1193
        %1195 = vmatprep.mubr.f32.mxu0 0.0
        %1196 = vmatmul.mubr.f32.gmra.mrb[0].mxu0 %v844
        %v1197 = vpop.f32.mrb[0].mxu0
        %v1198 = vadd.f32 %v831, %v1197
        %v1199 = vpop.f32.mrb[0].mxu0
        %v1200 = vadd.f32 %v831, %v1199
        %1201 = vdwg.mxu0
        %v1202 = vmax.f32 %v913, 0.0
        %v1203 = vmax.f32 %v915, 0.0
        %v1204 = vmax.f32 %v1002, 0.0
        %v1205 = vmax.f32 %v1004, 0.0
        %v1206 = vmax.f32 %v1091, 0.0
        %v1207 = vmax.f32 %v1093, 0.0
        %v1208 = vmax.f32 %v1180, 0.0
        %v1209 = vmax.f32 %v1182, 0.0
        %v1210 = vmax.f32 %v919, 0.0
        %v1211 = vmax.f32 %v921, 0.0
        %v1212 = vmax.f32 %v1008, 0.0
        %v1213 = vmax.f32 %v1010, 0.0
        %v1214 = vmax.f32 %v1097, 0.0
        %v1215 = vmax.f32 %v1099, 0.0
        %v1216 = vmax.f32 %v1186, 0.0
        %v1217 = vmax.f32 %v1188, 0.0
        %v1218 = vmax.f32 %v925, 0.0
        %v1219 = vmax.f32 %v927, 0.0
        %v1220 = vmax.f32 %v1014, 0.0
        %v1221 = vmax.f32 %v1016, 0.0
        %v1222 = vmax.f32 %v1103, 0.0
        %v1223 = vmax.f32 %v1105, 0.0
        %v1224 = vmax.f32 %v1192, 0.0
        %v1225 = vmax.f32 %v1194, 0.0
        %v1226 = vmax.f32 %v931, 0.0
        %v1227 = vmax.f32 %v933, 0.0
        %v1228 = vmax.f32 %v1020, 0.0
        %v1229 = vmax.f32 %v1022, 0.0
        %v1230 = vmax.f32 %v1109, 0.0
        %v1231 = vmax.f32 %v1111, 0.0
        %v1232 = vmax.f32 %v1198, 0.0
        %v1233 = vmax.f32 %v1200, 0.0
        %v1234 = vld [vmem:[%s3] sm:$0xff]
        %v1235 = vld [vmem:[%s3 + $0x8] sm:$0xff]
        %v1236 = vld [vmem:[%s3 + $0x10] sm:$0xff]
        %v1237 = vld [vmem:[%s3 + $0x18] sm:$0xff]
        %v1239 = vsel %vm833, %v1234, 0
        %v1242 = vsel %vm833, %v1235, 0
        %v1245 = vsel %vm833, %v1236, 0
        %v1248 = vsel %vm833, %v1237, 0
        %1250 = vmatprep.subr.mxu0 %v1203
        %1251 = vmatpush1.msra.mxu0 %v1202
        %1252 = vmatprep.subr.mxu0 %v1211
        %1253 = vmatpush1.msra.mxu0 %v1210
        %1254 = vmatprep.subr.mxu0 %v1219
        %1255 = vmatpush1.msra.mxu0 %v1218
        %1256 = vmatprep.subr.mxu0 %v1227
        %1257 = vmatpush1.msra.mxu0 %v1226
        %1258 = vmatprep.subr.mxu0 0.0
        %1259 = vmatpush1.msra.mxu0 0.0
        %1260 = vmatprep.subr.mxu0 0.0
        %1261 = vmatpush1.msra.mxu0 0.0
        %1262 = vmatprep.subr.mxu0 0.0
        %1263 = vmatpush1.msra.mxu0 0.0
        %1264 = vmatprep.subr.mxu0 0.0
        %1265 = vmatpush1.msra.mxu0 0.0
        %1266 = vmatprep.subr.mxu0 0.0
        %1267 = vmatpush1.msra.mxu0 0.0
        %1268 = vmatprep.subr.mxu0 0.0
        %1269 = vmatpush1.msra.mxu0 0.0
        %1270 = vmatprep.subr.mxu0 0.0
        %1271 = vmatpush1.msra.mxu0 0.0
        %1272 = vmatprep.subr.mxu0 0.0
        %1273 = vmatpush1.msra.mxu0 0.0
        %1274 = vmatprep.subr.mxu0 0.0
        %1275 = vmatpush1.msra.mxu0 0.0
        %1276 = vmatprep.subr.mxu0 0.0
        %1277 = vmatpush1.msra.mxu0 0.0
        %1278 = vmatprep.subr.mxu0 0.0
        %1279 = vmatpush1.msra.mxu0 0.0
        %1280 = vmatprep.subr.mxu0 0.0
        %1281 = vmatpush1.msra.mxu0 0.0
        %1282 = vmatprep.subr.mxu0 0.0
        %1283 = vmatpush1.msra.mxu0 0.0
        %1284 = vmatprep.subr.mxu0 0.0
        %1285 = vmatpush1.msra.mxu0 0.0
        %1286 = vmatprep.subr.mxu0 0.0
        %1287 = vmatpush1.msra.mxu0 0.0
        %1288 = vmatprep.subr.mxu0 0.0
        %1289 = vmatpush1.msra.mxu0 0.0
        %1290 = vmatprep.subr.mxu0 0.0
        %1291 = vmatpush1.msra.mxu0 0.0
        %1292 = vmatprep.subr.mxu0 0.0
        %1293 = vmatpush1.msra.mxu0 0.0
        %1294 = vmatprep.subr.mxu0 0.0
        %1295 = vmatpush1.msra.mxu0 0.0
        %1296 = vmatprep.subr.mxu0 0.0
        %1297 = vmatpush1.msra.mxu0 0.0
        %1298 = vmatprep.subr.mxu0 0.0
        %1299 = vmatpush1.msra.mxu0 0.0
        %1300 = vmatprep.subr.mxu0 0.0
        %1301 = vmatpush1.msra.mxu0 0.0
        %1302 = vmatprep.subr.mxu0 0.0
        %1303 = vmatpush1.msra.mxu0 0.0
        %1304 = vmatprep.subr.mxu0 0.0
        %1305 = vmatpush1.msra.mxu0 0.0
        %1306 = vmatprep.subr.mxu0 0.0
        %1307 = vmatpush1.msra.mxu0 0.0
        %1308 = vmatprep.subr.mxu0 0.0
        %1309 = vmatpush1.msra.mxu0 0.0
        %1310 = vmatprep.subr.mxu0 0.0
        %1311 = vmatpush1.msra.mxu0 0.0
        %1312 = vmatprep.subr.mxu0 0.0
        %1313 = vmatpush1.msra.mxu0 0.0
        %1314 = vmatprep.mubr.f32.mxu0 0.0
        %1315 = vmatmul.mubr.f32.gmra.mrb[0].mxu0 %v1239
        %v1316 = vpop.f32.mrb[0].mxu0
        %v1317 = vadd.f32 0.0, %v1316
        %v1318 = vpop.f32.mrb[0].mxu0
        %v1319 = vadd.f32 0.0, %v1318
        %1320 = vmatprep.mubr.f32.mxu0 0.0
        %1321 = vmatmul.mubr.f32.gmra.mrb[0].mxu0 %v1242
        %v1322 = vpop.f32.mrb[0].mxu0
        %v1323 = vadd.f32 0.0, %v1322
        %v1324 = vpop.f32.mrb[0].mxu0
        %v1325 = vadd.f32 0.0, %v1324
        %1326 = vmatprep.mubr.f32.mxu0 0.0
        %1327 = vmatmul.mubr.f32.gmra.mrb[0].mxu0 %v1245
        %v1328 = vpop.f32.mrb[0].mxu0
        %v1329 = vadd.f32 0.0, %v1328
        %v1330 = vpop.f32.mrb[0].mxu0
        %v1331 = vadd.f32 0.0, %v1330
        %1332 = vmatprep.mubr.f32.mxu0 0.0
        %1333 = vmatmul.mubr.f32.gmra.mrb[0].mxu0 %v1248
        %v1334 = vpop.f32.mrb[0].mxu0
        %v1335 = vadd.f32 0.0, %v1334
        %v1336 = vpop.f32.mrb[0].mxu0
        %v1337 = vadd.f32 0.0, %v1336
        %1338 = vdwg.mxu0
        %1339 = vmatprep.subr.mxu0 %v1205
        %1340 = vmatpush1.msra.mxu0 %v1204
        %1341 = vmatprep.subr.mxu0 %v1213
        %1342 = vmatpush1.msra.mxu0 %v1212
        %1343 = vmatprep.subr.mxu0 %v1221
        %1344 = vmatpush1.msra.mxu0 %v1220
        %1345 = vmatprep.subr.mxu0 %v1229
        %1346 = vmatpush1.msra.mxu0 %v1228
        %1347 = vmatprep.subr.mxu0 0.0
        %1348 = vmatpush1.msra.mxu0 0.0
        %1349 = vmatprep.subr.mxu0 0.0
        %1350 = vmatpush1.msra.mxu0 0.0
        %1351 = vmatprep.subr.mxu0 0.0
        %1352 = vmatpush1.msra.mxu0 0.0
        %1353 = vmatprep.subr.mxu0 0.0
        %1354 = vmatpush1.msra.mxu0 0.0
        %1355 = vmatprep.subr.mxu0 0.0
        %1356 = vmatpush1.msra.mxu0 0.0
        %1357 = vmatprep.subr.mxu0 0.0
        %1358 = vmatpush1.msra.mxu0 0.0
        %1359 = vmatprep.subr.mxu0 0.0
        %1360 = vmatpush1.msra.mxu0 0.0
        %1361 = vmatprep.subr.mxu0 0.0
        %1362 = vmatpush1.msra.mxu0 0.0
        %1363 = vmatprep.subr.mxu0 0.0
        %1364 = vmatpush1.msra.mxu0 0.0
        %1365 = vmatprep.subr.mxu0 0.0
        %1366 = vmatpush1.msra.mxu0 0.0
        %1367 = vmatprep.subr.mxu0 0.0
        %1368 = vmatpush1.msra.mxu0 0.0
        %1369 = vmatprep.subr.mxu0 0.0
        %1370 = vmatpush1.msra.mxu0 0.0
        %1371 = vmatprep.subr.mxu0 0.0
        %1372 = vmatpush1.msra.mxu0 0.0
        %1373 = vmatprep.subr.mxu0 0.0
        %1374 = vmatpush1.msra.mxu0 0.0
        %1375 = vmatprep.subr.mxu0 0.0
        %1376 = vmatpush1.msra.mxu0 0.0
        %1377 = vmatprep.subr.mxu0 0.0
        %1378 = vmatpush1.msra.mxu0 0.0
        %1379 = vmatprep.subr.mxu0 0.0
        %1380 = vmatpush1.msra.mxu0 0.0
        %1381 = vmatprep.subr.mxu0 0.0
        %1382 = vmatpush1.msra.mxu0 0.0
        %1383 = vmatprep.subr.mxu0 0.0
        %1384 = vmatpush1.msra.mxu0 0.0
        %1385 = vmatprep.subr.mxu0 0.0
        %1386 = vmatpush1.msra.mxu0 0.0
        %1387 = vmatprep.subr.mxu0 0.0
        %1388 = vmatpush1.msra.mxu0 0.0
        %1389 = vmatprep.subr.mxu0 0.0
        %1390 = vmatpush1.msra.mxu0 0.0
        %1391 = vmatprep.subr.mxu0 0.0
        %1392 = vmatpush1.msra.mxu0 0.0
        %1393 = vmatprep.subr.mxu0 0.0
        %1394 = vmatpush1.msra.mxu0 0.0
        %1395 = vmatprep.subr.mxu0 0.0
        %1396 = vmatpush1.msra.mxu0 0.0
        %1397 = vmatprep.subr.mxu0 0.0
        %1398 = vmatpush1.msra.mxu0 0.0
        %1399 = vmatprep.subr.mxu0 0.0
        %1400 = vmatpush1.msra.mxu0 0.0
        %1401 = vmatprep.subr.mxu0 0.0
        %1402 = vmatpush1.msra.mxu0 0.0
        %1403 = vmatprep.mubr.f32.mxu0 0.0
        %1404 = vmatmul.mubr.f32.gmra.mrb[0].mxu0 %v1239
        %v1405 = vpop.f32.mrb[0].mxu0
        %v1406 = vadd.f32 0.0, %v1405
        %v1407 = vpop.f32.mrb[0].mxu0
        %v1408 = vadd.f32 0.0, %v1407
        %1409 = vmatprep.mubr.f32.mxu0 0.0
        %1410 = vmatmul.mubr.f32.gmra.mrb[0].mxu0 %v1242
        %v1411 = vpop.f32.mrb[0].mxu0
        %v1412 = vadd.f32 0.0, %v1411
        %v1413 = vpop.f32.mrb[0].mxu0
        %v1414 = vadd.f32 0.0, %v1413
        %1415 = vmatprep.mubr.f32.mxu0 0.0
        %1416 = vmatmul.mubr.f32.gmra.mrb[0].mxu0 %v1245
        %v1417 = vpop.f32.mrb[0].mxu0
        %v1418 = vadd.f32 0.0, %v1417
        %v1419 = vpop.f32.mrb[0].mxu0
        %v1420 = vadd.f32 0.0, %v1419
        %1421 = vmatprep.mubr.f32.mxu0 0.0
        %1422 = vmatmul.mubr.f32.gmra.mrb[0].mxu0 %v1248
        %v1423 = vpop.f32.mrb[0].mxu0
        %v1424 = vadd.f32 0.0, %v1423
        %v1425 = vpop.f32.mrb[0].mxu0
        %v1426 = vadd.f32 0.0, %v1425
        %1427 = vdwg.mxu0
        %1428 = vmatprep.subr.mxu0 %v1207
        %1429 = vmatpush1.msra.mxu0 %v1206
        %1430 = vmatprep.subr.mxu0 %v1215
        %1431 = vmatpush1.msra.mxu0 %v1214
        %1432 = vmatprep.subr.mxu0 %v1223
        %1433 = vmatpush1.msra.mxu0 %v1222
        %1434 = vmatprep.subr.mxu0 %v1231
        %1435 = vmatpush1.msra.mxu0 %v1230
        %1436 = vmatprep.subr.mxu0 0.0
        %1437 = vmatpush1.msra.mxu0 0.0
        %1438 = vmatprep.subr.mxu0 0.0
        %1439 = vmatpush1.msra.mxu0 0.0
        %1440 = vmatprep.subr.mxu0 0.0
        %1441 = vmatpush1.msra.mxu0 0.0
        %1442 = vmatprep.subr.mxu0 0.0
        %1443 = vmatpush1.msra.mxu0 0.0
        %1444 = vmatprep.subr.mxu0 0.0
        %1445 = vmatpush1.msra.mxu0 0.0
        %1446 = vmatprep.subr.mxu0 0.0
        %1447 = vmatpush1.msra.mxu0 0.0
        %1448 = vmatprep.subr.mxu0 0.0
        %1449 = vmatpush1.msra.mxu0 0.0
        %1450 = vmatprep.subr.mxu0 0.0
        %1451 = vmatpush1.msra.mxu0 0.0
        %1452 = vmatprep.subr.mxu0 0.0
        %1453 = vmatpush1.msra.mxu0 0.0
        %1454 = vmatprep.subr.mxu0 0.0
        %1455 = vmatpush1.msra.mxu0 0.0
        %1456 = vmatprep.subr.mxu0 0.0
        %1457 = vmatpush1.msra.mxu0 0.0
        %1458 = vmatprep.subr.mxu0 0.0
        %1459 = vmatpush1.msra.mxu0 0.0
        %1460 = vmatprep.subr.mxu0 0.0
        %1461 = vmatpush1.msra.mxu0 0.0
        %1462 = vmatprep.subr.mxu0 0.0
        %1463 = vmatpush1.msra.mxu0 0.0
        %1464 = vmatprep.subr.mxu0 0.0
        %1465 = vmatpush1.msra.mxu0 0.0
        %1466 = vmatprep.subr.mxu0 0.0
        %1467 = vmatpush1.msra.mxu0 0.0
        %1468 = vmatprep.subr.mxu0 0.0
        %1469 = vmatpush1.msra.mxu0 0.0
        %1470 = vmatprep.subr.mxu0 0.0
        %1471 = vmatpush1.msra.mxu0 0.0
        %1472 = vmatprep.subr.mxu0 0.0
        %1473 = vmatpush1.msra.mxu0 0.0
        %1474 = vmatprep.subr.mxu0 0.0
        %1475 = vmatpush1.msra.mxu0 0.0
        %1476 = vmatprep.subr.mxu0 0.0
        %1477 = vmatpush1.msra.mxu0 0.0
        %1478 = vmatprep.subr.mxu0 0.0
        %1479 = vmatpush1.msra.mxu0 0.0
        %1480 = vmatprep.subr.mxu0 0.0
        %1481 = vmatpush1.msra.mxu0 0.0
        %1482 = vmatprep.subr.mxu0 0.0
        %1483 = vmatpush1.msra.mxu0 0.0
        %1484 = vmatprep.subr.mxu0 0.0
        %1485 = vmatpush1.msra.mxu0 0.0
        %1486 = vmatprep.subr.mxu0 0.0
        %1487 = vmatpush1.msra.mxu0 0.0
        %1488 = vmatprep.subr.mxu0 0.0
        %1489 = vmatpush1.msra.mxu0 0.0
        %1490 = vmatprep.subr.mxu0 0.0
        %1491 = vmatpush1.msra.mxu0 0.0
        %1492 = vmatprep.mubr.f32.mxu0 0.0
        %1493 = vmatmul.mubr.f32.gmra.mrb[0].mxu0 %v1239
        %v1494 = vpop.f32.mrb[0].mxu0
        %v1495 = vadd.f32 0.0, %v1494
        %v1496 = vpop.f32.mrb[0].mxu0
        %v1497 = vadd.f32 0.0, %v1496
        %1498 = vmatprep.mubr.f32.mxu0 0.0
        %1499 = vmatmul.mubr.f32.gmra.mrb[0].mxu0 %v1242
        %v1500 = vpop.f32.mrb[0].mxu0
        %v1501 = vadd.f32 0.0, %v1500
        %v1502 = vpop.f32.mrb[0].mxu0
        %v1503 = vadd.f32 0.0, %v1502
        %1504 = vmatprep.mubr.f32.mxu0 0.0
        %1505 = vmatmul.mubr.f32.gmra.mrb[0].mxu0 %v1245
        %v1506 = vpop.f32.mrb[0].mxu0
        %v1507 = vadd.f32 0.0, %v1506
        %v1508 = vpop.f32.mrb[0].mxu0
        %v1509 = vadd.f32 0.0, %v1508
        %1510 = vmatprep.mubr.f32.mxu0 0.0
        %1511 = vmatmul.mubr.f32.gmra.mrb[0].mxu0 %v1248
        %v1512 = vpop.f32.mrb[0].mxu0
        %v1513 = vadd.f32 0.0, %v1512
        %v1514 = vpop.f32.mrb[0].mxu0
        %v1515 = vadd.f32 0.0, %v1514
        %1516 = vdwg.mxu0
        %1517 = vmatprep.subr.mxu0 %v1209
        %1518 = vmatpush1.msra.mxu0 %v1208
        %1519 = vmatprep.subr.mxu0 %v1217
        %1520 = vmatpush1.msra.mxu0 %v1216
        %1521 = vmatprep.subr.mxu0 %v1225
        %1522 = vmatpush1.msra.mxu0 %v1224
        %1523 = vmatprep.subr.mxu0 %v1233
        %1524 = vmatpush1.msra.mxu0 %v1232
        %1525 = vmatprep.subr.mxu0 0.0
        %1526 = vmatpush1.msra.mxu0 0.0
        %1527 = vmatprep.subr.mxu0 0.0
        %1528 = vmatpush1.msra.mxu0 0.0
        %1529 = vmatprep.subr.mxu0 0.0
        %1530 = vmatpush1.msra.mxu0 0.0
        %1531 = vmatprep.subr.mxu0 0.0
        %1532 = vmatpush1.msra.mxu0 0.0
        %1533 = vmatprep.subr.mxu0 0.0
        %1534 = vmatpush1.msra.mxu0 0.0
        %1535 = vmatprep.subr.mxu0 0.0
        %1536 = vmatpush1.msra.mxu0 0.0
        %1537 = vmatprep.subr.mxu0 0.0
        %1538 = vmatpush1.msra.mxu0 0.0
        %1539 = vmatprep.subr.mxu0 0.0
        %1540 = vmatpush1.msra.mxu0 0.0
        %1541 = vmatprep.subr.mxu0 0.0
        %1542 = vmatpush1.msra.mxu0 0.0
        %1543 = vmatprep.subr.mxu0 0.0
        %1544 = vmatpush1.msra.mxu0 0.0
        %1545 = vmatprep.subr.mxu0 0.0
        %1546 = vmatpush1.msra.mxu0 0.0
        %1547 = vmatprep.subr.mxu0 0.0
        %1548 = vmatpush1.msra.mxu0 0.0
        %1549 = vmatprep.subr.mxu0 0.0
        %1550 = vmatpush1.msra.mxu0 0.0
        %1551 = vmatprep.subr.mxu0 0.0
        %1552 = vmatpush1.msra.mxu0 0.0
        %1553 = vmatprep.subr.mxu0 0.0
        %1554 = vmatpush1.msra.mxu0 0.0
        %1555 = vmatprep.subr.mxu0 0.0
        %1556 = vmatpush1.msra.mxu0 0.0
        %1557 = vmatprep.subr.mxu0 0.0
        %1558 = vmatpush1.msra.mxu0 0.0
        %1559 = vmatprep.subr.mxu0 0.0
        %1560 = vmatpush1.msra.mxu0 0.0
        %1561 = vmatprep.subr.mxu0 0.0
        %1562 = vmatpush1.msra.mxu0 0.0
        %1563 = vmatprep.subr.mxu0 0.0
        %1564 = vmatpush1.msra.mxu0 0.0
        %1565 = vmatprep.subr.mxu0 0.0
        %1566 = vmatpush1.msra.mxu0 0.0
        %1567 = vmatprep.subr.mxu0 0.0
        %1568 = vmatpush1.msra.mxu0 0.0
        %1569 = vmatprep.subr.mxu0 0.0
        %1570 = vmatpush1.msra.mxu0 0.0
        %1571 = vmatprep.subr.mxu0 0.0
        %1572 = vmatpush1.msra.mxu0 0.0
        %1573 = vmatprep.subr.mxu0 0.0
        %1574 = vmatpush1.msra.mxu0 0.0
        %1575 = vmatprep.subr.mxu0 0.0
        %1576 = vmatpush1.msra.mxu0 0.0
        %1577 = vmatprep.subr.mxu0 0.0
        %1578 = vmatpush1.msra.mxu0 0.0
        %1579 = vmatprep.subr.mxu0 0.0
        %1580 = vmatpush1.msra.mxu0 0.0
        %1581 = vmatprep.mubr.f32.mxu0 0.0
        %1582 = vmatmul.mubr.f32.gmra.mrb[0].mxu0 %v1239
        %v1583 = vpop.f32.mrb[0].mxu0
        %v1584 = vadd.f32 0.0, %v1583
        %v1585 = vpop.f32.mrb[0].mxu0
        %v1586 = vadd.f32 0.0, %v1585
        %1587 = vmatprep.mubr.f32.mxu0 0.0
        %1588 = vmatmul.mubr.f32.gmra.mrb[0].mxu0 %v1242
        %v1589 = vpop.f32.mrb[0].mxu0
        %v1590 = vadd.f32 0.0, %v1589
        %v1591 = vpop.f32.mrb[0].mxu0
        %v1592 = vadd.f32 0.0, %v1591
        %1593 = vmatprep.mubr.f32.mxu0 0.0
        %1594 = vmatmul.mubr.f32.gmra.mrb[0].mxu0 %v1245
        %v1595 = vpop.f32.mrb[0].mxu0
        %v1596 = vadd.f32 0.0, %v1595
        %v1597 = vpop.f32.mrb[0].mxu0
        %v1598 = vadd.f32 0.0, %v1597
        %1599 = vmatprep.mubr.f32.mxu0 0.0
        %1600 = vmatmul.mubr.f32.gmra.mrb[0].mxu0 %v1248
        %v1601 = vpop.f32.mrb[0].mxu0
        %v1602 = vadd.f32 0.0, %v1601
        %v1603 = vpop.f32.mrb[0].mxu0
        %v1604 = vadd.f32 0.0, %v1603
        %1605 = vdwg.mxu0
        %v1606 = vadd.f32 %v492, %v1317
        %v1607 = vadd.f32 %v494, %v1319
        %v1608 = vadd.f32 %v581, %v1406
        %v1609 = vadd.f32 %v583, %v1408
        %v1610 = vadd.f32 %v670, %v1495
        %v1611 = vadd.f32 %v672, %v1497
        %v1612 = vadd.f32 %v759, %v1584
        %v1613 = vadd.f32 %v761, %v1586
        %v1614 = vadd.f32 %v498, %v1323
        %v1615 = vadd.f32 %v500, %v1325
        %v1616 = vadd.f32 %v587, %v1412
        %v1617 = vadd.f32 %v589, %v1414
        %v1618 = vadd.f32 %v676, %v1501
        %v1619 = vadd.f32 %v678, %v1503
        %v1620 = vadd.f32 %v765, %v1590
        %v1621 = vadd.f32 %v767, %v1592
        %v1622 = vadd.f32 %v504, %v1329
        %v1623 = vadd.f32 %v506, %v1331
        %v1624 = vadd.f32 %v593, %v1418
        %v1625 = vadd.f32 %v595, %v1420
        %v1626 = vadd.f32 %v682, %v1507
        %v1627 = vadd.f32 %v684, %v1509
        %v1628 = vadd.f32 %v771, %v1596
        %v1629 = vadd.f32 %v773, %v1598
        %v1630 = vadd.f32 %v510, %v1335
        %v1631 = vadd.f32 %v512, %v1337
        %v1632 = vadd.f32 %v599, %v1424
        %v1633 = vadd.f32 %v601, %v1426
        %v1634 = vadd.f32 %v688, %v1513
        %v1635 = vadd.f32 %v690, %v1515
        %v1636 = vadd.f32 %v777, %v1602
        %v1637 = vadd.f32 %v779, %v1604
        %1638 = vset.pattern.permute.xlu0 2
        %1639 = vperm.xlu0 %1638, %v359
        %v1640 = vpop.permute.xlu0 %1639
        %1642 = vset.pattern.permute.xlu0 2
        %1643 = vperm.xlu0 %1642, %v360
        %v1644 = vpop.permute.xlu0 %1643
        %1646 = vset.pattern.permute.xlu0 2
        %1647 = vperm.xlu0 %1646, %v361
        %v1648 = vpop.permute.xlu0 %1647
        %1650 = vset.pattern.permute.xlu0 2
        %1651 = vperm.xlu0 %1650, %v362
        %v1652 = vpop.permute.xlu0 %1651
        %v1654 = vmul.f32 %v1640, %v1606
        %v1655 = vmul.f32 %v1640, %v1607
        %v1656 = vmul.f32 %v1640, %v1608
        %v1657 = vmul.f32 %v1640, %v1609
        %v1658 = vmul.f32 %v1640, %v1610
        %v1659 = vmul.f32 %v1640, %v1611
        %v1660 = vmul.f32 %v1640, %v1612
        %v1661 = vmul.f32 %v1640, %v1613
        %v1662 = vmul.f32 %v1644, %v1614
        %v1663 = vmul.f32 %v1644, %v1615
        %v1664 = vmul.f32 %v1644, %v1616
        %v1665 = vmul.f32 %v1644, %v1617
        %v1666 = vmul.f32 %v1644, %v1618
        %v1667 = vmul.f32 %v1644, %v1619
        %v1668 = vmul.f32 %v1644, %v1620
        %v1669 = vmul.f32 %v1644, %v1621
        %v1670 = vmul.f32 %v1648, %v1622
        %v1671 = vmul.f32 %v1648, %v1623
        %v1672 = vmul.f32 %v1648, %v1624
        %v1673 = vmul.f32 %v1648, %v1625
        %v1674 = vmul.f32 %v1648, %v1626
        %v1675 = vmul.f32 %v1648, %v1627
        %v1676 = vmul.f32 %v1648, %v1628
        %v1677 = vmul.f32 %v1648, %v1629
        %v1678 = vmul.f32 %v1652, %v1630
        %v1679 = vmul.f32 %v1652, %v1631
        %v1680 = vmul.f32 %v1652, %v1632
        %v1681 = vmul.f32 %v1652, %v1633
        %v1682 = vmul.f32 %v1652, %v1634
        %v1683 = vmul.f32 %v1652, %v1635
        %v1684 = vmul.f32 %v1652, %v1636
        %v1685 = vmul.f32 %v1652, %v1637
        %v1686 = vadd.f32 %v1654, %v1662
        %v1687 = vadd.f32 %v1686, %v1670
        %v1688 = vadd.f32 %v1687, %v1678
        %v1689 = vrot.slane %v1688, 4
        %v1690 = vadd.f32 %v1688, %v1689
        %v1691 = vrot.slane %v1690, 2
        %v1692 = vadd.f32 %v1690, %v1691
        %v1693 = vrot.slane %v1692, 1
        %v1694 = vadd.f32 %v1692, %v1693
        %v1695 = vadd.f32 %v1655, %v1663
        %v1696 = vadd.f32 %v1695, %v1671
        %v1697 = vadd.f32 %v1696, %v1679
        %v1698 = vrot.slane %v1697, 4
        %v1699 = vadd.f32 %v1697, %v1698
        %v1700 = vrot.slane %v1699, 2
        %v1701 = vadd.f32 %v1699, %v1700
        %v1702 = vrot.slane %v1701, 1
        %v1703 = vadd.f32 %v1701, %v1702
        %v1704 = vadd.f32 %v1656, %v1664
        %v1705 = vadd.f32 %v1704, %v1672
        %v1706 = vadd.f32 %v1705, %v1680
        %v1707 = vrot.slane %v1706, 4
        %v1708 = vadd.f32 %v1706, %v1707
        %v1709 = vrot.slane %v1708, 2
        %v1710 = vadd.f32 %v1708, %v1709
        %v1711 = vrot.slane %v1710, 1
        %v1712 = vadd.f32 %v1710, %v1711
        %v1713 = vadd.f32 %v1657, %v1665
        %v1714 = vadd.f32 %v1713, %v1673
        %v1715 = vadd.f32 %v1714, %v1681
        %v1716 = vrot.slane %v1715, 4
        %v1717 = vadd.f32 %v1715, %v1716
        %v1718 = vrot.slane %v1717, 2
        %v1719 = vadd.f32 %v1717, %v1718
        %v1720 = vrot.slane %v1719, 1
        %v1721 = vadd.f32 %v1719, %v1720
        %v1722 = vadd.f32 %v1658, %v1666
        %v1723 = vadd.f32 %v1722, %v1674
        %v1724 = vadd.f32 %v1723, %v1682
        %v1725 = vrot.slane %v1724, 4
        %v1726 = vadd.f32 %v1724, %v1725
        %v1727 = vrot.slane %v1726, 2
        %v1728 = vadd.f32 %v1726, %v1727
        %v1729 = vrot.slane %v1728, 1
        %v1730 = vadd.f32 %v1728, %v1729
        %v1731 = vadd.f32 %v1659, %v1667
        %v1732 = vadd.f32 %v1731, %v1675
        %v1733 = vadd.f32 %v1732, %v1683
        %v1734 = vrot.slane %v1733, 4
        %v1735 = vadd.f32 %v1733, %v1734
        %v1736 = vrot.slane %v1735, 2
        %v1737 = vadd.f32 %v1735, %v1736
        %v1738 = vrot.slane %v1737, 1
        %v1739 = vadd.f32 %v1737, %v1738
        %v1740 = vadd.f32 %v1660, %v1668
        %v1741 = vadd.f32 %v1740, %v1676
        %v1742 = vadd.f32 %v1741, %v1684
        %v1743 = vrot.slane %v1742, 4
        %v1744 = vadd.f32 %v1742, %v1743
        %v1745 = vrot.slane %v1744, 2
        %v1746 = vadd.f32 %v1744, %v1745
        %v1747 = vrot.slane %v1746, 1
        %v1748 = vadd.f32 %v1746, %v1747
        %v1749 = vadd.f32 %v1661, %v1669
        %v1750 = vadd.f32 %v1749, %v1677
        %v1751 = vadd.f32 %v1750, %v1685
        %v1752 = vrot.slane %v1751, 4
        %v1753 = vadd.f32 %v1751, %v1752
        %v1754 = vrot.slane %v1753, 2
        %v1755 = vadd.f32 %v1753, %v1754
        %v1756 = vrot.slane %v1755, 1
        %v1757 = vadd.f32 %v1755, %v1756
        %v1758 = vld [vmem:[%s353] sm:$0x1]
        %1760 = vset.pattern.permute.xlu0 0
        %1761 = vperm.xlu0 %1760, %v1758
        %v1762 = vpop.permute.xlu0 %1761
        %v1764 = vlaneseq
        %v1765 = vshrl.u32 %v1764, 7
        %v1766 = vsub.s32 0, %v1765
        %v1767 = vrot.slane %v1762, %v1766
        %v1768 = vadd.f32 %v1694, %v1767
        %v1769 = vadd.f32 %v1703, %v1767
        %v1770 = vadd.f32 %v1712, %v1767
        %v1771 = vadd.f32 %v1721, %v1767
        %v1772 = vadd.f32 %v1730, %v1767
        %v1773 = vadd.f32 %v1739, %v1767
        %v1774 = vadd.f32 %v1748, %v1767
        %v1775 = vadd.f32 %v1757, %v1767
        %v1784 = vcombine.low %v1768, %v1769
        %v1785 = vcombine.low %v1770, %v1771
        %v1786 = vcombine.low %v1772, %v1773
        %v1787 = vcombine.low %v1774, %v1775
        %v1789 = vunpack.c.l.s4 1966171168
        %v1790 = vunpack.c.0.s8 %v1789
        %v1791 = vlaneseq
        %v1792 = vshrl.u32 %v1791, 7
        %v1793 = vsub.s32 %v1790, %v1792
        %v1794 = vrot.slane %v1784, %v1793
        %v1796 = vunpack.c.l.s4 1966171168
        %v1797 = vunpack.c.0.s8 %v1796
        %v1798 = vlaneseq
        %v1799 = vshrl.u32 %v1798, 7
        %v1800 = vsub.s32 %v1797, %v1799
        %v1801 = vrot.slane %v1785, %v1800
        %v1803 = vunpack.c.l.s4 1966171168
        %v1804 = vunpack.c.0.s8 %v1803
        %v1805 = vlaneseq
        %v1806 = vshrl.u32 %v1805, 7
        %v1807 = vsub.s32 %v1804, %v1806
        %v1808 = vrot.slane %v1786, %v1807
        %v1810 = vunpack.c.l.s4 1966171168
        %v1811 = vunpack.c.0.s8 %v1810
        %v1812 = vlaneseq
        %v1813 = vshrl.u32 %v1812, 7
        %v1814 = vsub.s32 %v1811, %v1813
        %v1815 = vrot.slane %v1787, %v1814
        %v1816 = vcombine.low %v1794, %v1801
        %v1817 = vcombine.low %v1808, %v1815
        %v1819 = vunpack.c.l.s4 1966171168
        %v1820 = vunpack.c.0.s8 %v1819
        %v1821 = vlaneseq
        %v1822 = vshrl.u32 %v1821, 7
        %v1823 = vsub.s32 %v1820, %v1822
        %v1824 = vrot.slane %v1816, %v1823
        %v1826 = vunpack.c.l.s4 1966171168
        %v1827 = vunpack.c.0.s8 %v1826
        %v1828 = vlaneseq
        %v1829 = vshrl.u32 %v1828, 7
        %v1830 = vsub.s32 %v1827, %v1829
        %v1831 = vrot.slane %v1817, %v1830
        %v1832 = vcombine.low %v1824, %v1831
        %1834 = vst [vmem:[%s325] sm:$0xff] %v1832
        %s1835 = sand.u32 %s195, 1
        %s1836 = scalar_lea.sflag [#allocation3], %s1835
        %s1837 = sand.u32 %s195, 1
        %s1838 = smul.addr %s1837, 8
        %s1839 = scalar_lea.vmem [#allocation2], %s1838
        // Predicated region
        $region45: #{tpu_custom_call.1} parent=43 // pred_check
          %p1840 = pneg %p205
        $region46: #{tpu_custom_call.1} parent=43 // pred_check_branch
          %1842 = sbr.rel (%p1840) target = $region48
        $region47: #{tpu_custom_call.1} parent=43 // pred_region
          %s1843 = smul.u32 8, %s25
          %s1845 = ssub.s32 128, 128
          %1846 = vsyncadd %s1836, %s1845
          %s1847 = smul.addr %s24, 16
          %s1848 = sadd.s32 %s1843, %s1847
          %s1849 = smul.addr %s1848, 16
          %s1850 = scalar_lea.hbm %s6, %s1849
          %s1852 = sshll.u32 %s1839, 4
          %s1853 = int_to_ptr.vmem [resolvable:$true] %s1852
          %1855 = dma.vmem_to_hbm [thread:$0]  %s1853, 128, %s1850, %s1836
        $region48: #{tpu_custom_call.1} parent=43 // pred_fallthru
          _
      $region44: #{tpu_custom_call.1} parent=5 // pred_fallthru
        _
      %p1856 = scmp.le.s32.totalorder 2, %s15
      // Predicated region
      $region49: #{tpu_custom_call.1} parent=5 // pred_check
        %p1857 = pneg %p1856
      $region50: #{tpu_custom_call.1} parent=5 // pred_check_branch
        %1859 = sbr.rel (%p1857) target = $region52
      $region51: #{tpu_custom_call.1} parent=5 // pred_region
        %s1860 = ssub.s32 %s15, 2
        // Predicated region
        $region53: #{tpu_custom_call.1} parent=51 // pred_check
          %p1861 = pneg %p211
        $region54: #{tpu_custom_call.1} parent=51 // pred_check_branch
          %1863 = sbr.rel (%p1861) target = $region56
        $region55: #{tpu_custom_call.1} parent=51 // pred_region
          %s1864 = sand.u32 %s196, 1
          %s1865 = scalar_lea.sflag [#allocation3], %s1864
          %s1866 = sand.u32 %s196, 1
          %s1867 = smul.addr %s1866, 8
          %s1868 = scalar_lea.vmem [#allocation2], %s1867
          %1869 = dma.done %s1865, 128
        $region56: #{tpu_custom_call.1} parent=51 // pred_fallthru
          _
      $region52: #{tpu_custom_call.1} parent=5 // pred_fallthru
        _
    $region6: #{tpu_custom_call.1} parent=1 // loop_footer
      %s19 = sadd.s32 1, %s15
    $region7: #{tpu_custom_call.1} parent=1 // loop_footer_branch
      %14 = sbr.rel target = $region3
    $region8: #{tpu_custom_call.1} parent=1 // loop_exit
      _
    %1870 = vsyncpa [#allocation3], 1
    %s1871 = scalar_lea.sflag [#allocation3], 1
    %1872 = vsyncpa %s1871, 1

</llo_original>
